<compile_context>
chip_gen: v6e
topology: v6e:2x2x1
jax: 0.10.0
libtpu: 0.0.40
codegen_flags: <defaults>
</compile_context>

<pallas_src>
import numpy as np

import jax
import jax.numpy as jnp
from jax.experimental import pallas as pl
from jax.experimental.pallas import tpu as pltpu

EPS = 1e-5
F32 = jnp.float32


# ----------------------------------------------------------------------------
# Fused kernel (single block, no grid -- everything VMEM resident)
# ----------------------------------------------------------------------------
def _net_fused_kernel(
    xw_ref,    # (B*24, 140)  conv1 LHS: kh-fused, batch-row-stacked input
    t1_ref,    # (140, 240)   conv1 Toeplitz, kh stacked along K
    b1l_ref,   # (1, 120)     conv1 bias tiled over W   (lane = w*10 + c)
    t2_ref,    # (5, 120, 160) conv2 Toeplitz, one matrix per kernel row kh
    b2l_ref,   # (1, 160)     conv2 bias tiled over W   (lane = w*20 + c)
    e1_ref,    # (5*B*8, B*24-1) pool1 row compaction + conv2 kh row-expansion
    c1_ref,    # (230, 120)   pool1 column compaction
    p2_ref,    # (4*B, B*8-1) pool2 row compaction (rows ordered (h, b))
    c2_ref,    # (140, 80)    pool2 column compaction
    r2_ref,    # (160, 20)    sums (w*20+c) lanes -> channel c
    r2t_ref,   # (20, 160)    broadcasts channel c -> (w*20+c) lanes
    g2_ref,    # (1, 20)      BatchNorm2d gamma
    be2_ref,   # (1, 20)      BatchNorm2d beta
    wd1_ref,   # (4, 80, 50)  dense1 weight regrouped per spatial row h
    bd1_ref,   # (1, 50)      dense1 bias
    g1_ref,    # (1, 50)      BatchNorm1d gamma
    be1_ref,   # (1, 50)      BatchNorm1d beta
    wd2_ref,   # (50, 10)     dense2 weight (transposed)
    bd2_ref,   # (1, 10)      dense2 bias
    out_ref,   # (B, 10)      log-softmax output
):
    B = out_ref.shape[0]

    def mm(a, b):
        return jnp.dot(a, b, preferred_element_type=F32)

    # ---- conv1: single batch-stacked, K-fused matmul ------------------------
    acc1 = mm(xw_ref[...], t1_ref[...])                      # (B*24, 240)

    # ---- pool1 rows (+ conv2 kh row-expansion) ------------------------------
    # rmax1[i] = max(acc1[i], acc1[i+1]); e1 picks rows b*24 + 2*(kh+h) and
    # lays the result out as rows (kh, b, h) so conv2 can slice per-kh blocks.
    rmax1 = jnp.maximum(acc1[:-1, :], acc1[1:, :])           # (B*24-1, 240)
    rowe1 = mm(e1_ref[...], rmax1)                           # (5*B*8, 240)

    # ---- pool1 cols + bias + relu  (lanes = w*10 + c, C=10) -----------------
    cmax1 = jnp.maximum(rowe1[:, :-10], rowe1[:, 10:])       # (5*B*8, 230)
    x1e = jnp.maximum(mm(cmax1, c1_ref[...]) + b1l_ref[...], 0.0)   # (5*B*8, 120)

    # ---- conv2: 5 batch-stacked dots (one per kernel row), f32 accumulate ---
    n2 = B * 8
    acc2 = mm(x1e[0:n2, :], t2_ref[0])
    for kh in range(1, 5):
        acc2 = acc2 + mm(x1e[kh * n2:(kh + 1) * n2, :], t2_ref[kh])
    y2 = acc2 + b2l_ref[...]                                 # (B*8, 160)

    # ---- BatchNorm2d (training mode): batch mean / biased var over (B,8,8) --
    cnt = float(B * 8 * 8)
    s_ch = mm(jnp.sum(y2, axis=0, keepdims=True), r2_ref[...])        # (1, 20)
    ss_ch = mm(jnp.sum(y2 * y2, axis=0, keepdims=True), r2_ref[...])  # (1, 20)
    mean2 = s_ch / cnt
    var2 = jnp.maximum(ss_ch / cnt - mean2 * mean2, 0.0)     # clamp >= 0
    scale2 = g2_ref[...] * jax.lax.rsqrt(var2 + EPS)         # (1, 20)
    shift2 = be2_ref[...] - mean2 * scale2                   # (1, 20)
    scale_l = mm(scale2, r2t_ref[...])                       # (1, 160)
    shift_l = mm(shift2, r2t_ref[...])                       # (1, 160)
    y2n = y2 * scale_l + shift_l                             # (B*8, 160)

    # ---- pool2 + relu  (lanes = w*20 + c, C=20) -----------------------------
    rmax2 = jnp.maximum(y2n[:-1, :], y2n[1:, :])             # (B*8-1, 160)
    rowc2 = mm(p2_ref[...], rmax2)                           # (4*B, 160) rows (h,b)
    cmax2 = jnp.maximum(rowc2[:, :-20], rowc2[:, 20:])       # (4*B, 140)
    x2 = jnp.maximum(mm(cmax2, c2_ref[...]), 0.0)            # (4*B, 80)

    # ---- dense1: 4 batch-stacked dots over torch's (c,h,w) flatten order ----
    z1 = bd1_ref[...] + mm(x2[0:B, :], wd1_ref[0])
    for h in range(1, 4):
        z1 = z1 + mm(x2[h * B:(h + 1) * B, :], wd1_ref[h])   # (B, 50)

    # ---- BatchNorm1d (training mode) + relu ---------------------------------
    mean1 = jnp.mean(z1, axis=0, keepdims=True)
    var1 = jnp.mean((z1 - mean1) ** 2, axis=0, keepdims=True)    # biased
    a1 = jnp.maximum(
        (z1 - mean1) * jax.lax.rsqrt(var1 + EPS) * g1_ref[...] + be1_ref[...],
        0.0)

    # ---- dense2 + relu + log_softmax ----------------------------------------
    z2 = jnp.maximum(mm(a1, wd2_ref[...]) + bd2_ref[...], 0.0)   # (B, 10)
    m = jnp.max(z2, axis=-1, keepdims=True)
    s = z2 - m
    out_ref[...] = s - jnp.log(jnp.sum(jnp.exp(s), axis=-1, keepdims=True))


# ----------------------------------------------------------------------------
# Wrapper-side constant / parameter re-packing (layout plumbing only)
# ----------------------------------------------------------------------------
def _conv_toeplitz(w, w_in, w_out):
    """Per-kernel-row Toeplitz matrices for a VALID stride-1 cross-correlation.

    w: (Cout, Cin, K, K).  Returns T of shape (K, w_in*Cin, w_out*Cout) with
    T[kh, wi*Cin + ci, wo*Cout + co] = w[co, ci, kh, wi - wo] if 0 <= wi-wo < K
    else 0, so that  out[h, wo*Cout+co] = sum_kh (x_rows[h+kh, :] @ T[kh]).
    """
    cout, cin, k, _ = w.shape
    d = np.arange(w_in)[:, None] - np.arange(w_out)[None, :]      # (w_in, w_out)
    valid = ((d >= 0) & (d < k)).astype(np.float32)
    dc = np.clip(d, 0, k - 1)
    g = w[:, :, :, dc]                                            # (Cout,Cin,K,w_in,w_out)
    g = g * jnp.asarray(valid)[None, None, None]
    t = jnp.transpose(g, (2, 3, 1, 4, 0))                         # (K,w_in,Cin,w_out,Cout)
    return t.reshape(k, w_in * cin, w_out * cout)


def _pool1_row_expand_selector(B):
    # Output rows ordered (kh, b, h); selects rmax1 row b*24 + 2*(kh + h),
    # i.e. the row-pooled conv1 row (kh + h) of image b, duplicated per kh so
    # conv2's per-kh dots can read aligned static (B*8)-row slices.
    m = np.zeros((5 * B * 8, B * 24 - 1), np.float32)
    for kh in range(5):
        for b in range(B):
            for h in range(8):
                m[(kh * B + b) * 8 + h, b * 24 + 2 * (kh + h)] = 1.0
    return m


def _pool2_row_selector(B):
    # Output rows ordered (h, b); selects rmax2 row b*8 + 2*h.
    m = np.zeros((4 * B, B * 8 - 1), np.float32)
    for h in range(4):
        for b in range(B):
            m[h * B + b, b * 8 + 2 * h] = 1.0
    return m


def _col_compact_selector(w_in, w_out, ch):
    # Input lanes j = w*ch + c of the column-shifted max (w < w_in - 1);
    # output lane pw*ch + c takes j = 2*pw*ch + c.
    j = np.arange((w_in - 1) * ch)[:, None]
    m = np.arange(w_out * ch)[None, :]
    tgt = 2 * (m // ch) * ch + (m % ch)
    return (j == tgt).astype(np.float32)


def _channel_sum_matrix(w, ch):
    j = np.arange(w * ch)
    return (j[:, None] % ch == np.arange(ch)[None, :]).astype(np.float32)


def net_forward(params, x):
    B, cin, H, W = x.shape
    assert (cin, H, W) == (1, 28, 28), "Net expects MNIST-shaped input"
    x2d = x.reshape(B, 28, 28).astype(F32)

    # conv1 LHS: kh-im2col along rows + batch row-stacking (input layout
    # plumbing in the wrapper; ~26 KB) -> lane = kh*28 + w, row = b*24 + h.
    xw = jnp.concatenate(
        [x2d[:, kh:kh + 24, :] for kh in range(5)], axis=2).reshape(B * 24, 140)

    # conv weights -> Toeplitz matmul operands (parameter re-packing)
    t1s = _conv_toeplitz(params["w1"], 28, 24).reshape(5 * 28, 240)  # (140, 240)
    t2 = _conv_toeplitz(params["w2"], 12, 8)                         # (5, 120, 160)
    b1l = jnp.tile(params["b1"], 12).reshape(1, 120)                 # lane = w*10+c
    b2l = jnp.tile(params["b2"], 8).reshape(1, 160)                  # lane = w*20+c

    # constant pooling / channel-reduction selectors (0/1 matrices)
    e1 = jnp.asarray(_pool1_row_expand_selector(B))        # (5*B*8, B*24-1)
    c1 = jnp.asarray(_col_compact_selector(24, 12, 10))    # (230, 120)
    p2 = jnp.asarray(_pool2_row_selector(B))               # (4*B, B*8-1)
    c2 = jnp.asarray(_col_compact_selector(8, 4, 20))      # (140, 80)
    r2 = jnp.asarray(_channel_sum_matrix(8, 20))           # (160, 20)
    r2t = jnp.asarray(_channel_sum_matrix(8, 20).T)        # (20, 160)

    # dense1 weight regrouped to consume the (h, w*20+c) activation layout,
    # matching torch's x.view(-1, 320) order (c*16 + h*4 + w).
    wd1h = jnp.transpose(
        params["wd1"].reshape(50, 20, 4, 4), (2, 3, 1, 0)).reshape(4, 80, 50)

    args = (
        xw, t1s, b1l, t2, b2l, e1, c1, p2, c2, r2, r2t,
        params["g2"].reshape(1, 20), params["be2"].reshape(1, 20),
        wd1h, params["bd1"].reshape(1, 50),
        params["g1"].reshape(1, 50), params["be1"].reshape(1, 50),
        params["wd2"].T, params["bd2"].reshape(1, 10),
    )
    return pl.pallas_call(
        _net_fused_kernel,
        out_shape=jax.ShapeDtypeStruct((B, 10), F32),
        in_specs=[pl.BlockSpec(memory_space=pltpu.MemorySpace.VMEM)] * len(args),
        out_specs=pl.BlockSpec(memory_space=pltpu.MemorySpace.VMEM),
    )(*args)


# ----------------------------------------------------------------------------
# Deterministic parameters (PyTorch __init__ shapes; BN affine defaults 1/0)
# ----------------------------------------------------------------------------
def init_params(key):
    ks = jax.random.split(key, 8)
    p = {}
    p["w1"] = jax.random.normal(ks[0], (10, 1, 5, 5), F32) * 0.10
    p["b1"] = jax.random.normal(ks[1], (10,), F32) * 0.10
    p["w2"] = jax.random.normal(ks[2], (20, 10, 5, 5), F32) * 0.06
    p["b2"] = jax.random.normal(ks[3], (20,), F32) * 0.06
    p["g2"] = jnp.ones((20,), F32)
    p["be2"] = jnp.zeros((20,), F32)
    p["wd1"] = jax.random.normal(ks[4], (50, 320), F32) * 0.05
    p["bd1"] = jax.random.normal(ks[5], (50,), F32) * 0.05
    p["g1"] = jnp.ones((50,), F32)
    p["be1"] = jnp.zeros((50,), F32)
    p["wd2"] = jax.random.normal(ks[6], (10, 50), F32) * 0.10
    p["bd2"] = jax.random.normal(ks[7], (10,), F32) * 0.10
    return p


# ----------------------------------------------------------------------------
# Pure-JAX (XLA) reference with identical training-mode BN semantics
# ----------------------------------------------------------------------------
def _bn_train(y, gamma, beta, axes):
    mean = jnp.mean(y, axis=axes, keepdims=True)
    var = jnp.mean((y - mean) ** 2, axis=axes, keepdims=True)
    return ((y - mean) * jax.lax.rsqrt(var + EPS) * gamma.reshape(mean.shape)
            + beta.reshape(mean.shape))


def net_reference(params, x):
    dn = ("NCHW", "OIHW", "NCHW")
    y = jax.lax.conv_general_dilated(x, params["w1"], (1, 1), "VALID",
                                     dimension_numbers=dn)
    y = y + params["b1"][None, :, None, None]
    y = jax.nn.relu(jax.lax.reduce_window(
        y, -jnp.inf, jax.lax.max, (1, 1, 2, 2), (1, 1, 2, 2), "VALID"))
    y = jax.lax.conv_general_dilated(y, params["w2"], (1, 1), "VALID",
                                     dimension_numbers=dn)
    y = y + params["b2"][None, :, None, None]
    y = _bn_train(y, params["g2"], params["be2"], (0, 2, 3))
    y = jax.nn.relu(jax.lax.reduce_window(
        y, -jnp.inf, jax.lax.max, (1, 1, 2, 2), (1, 1, 2, 2), "VALID"))
    y = y.reshape(x.shape[0], 320)
    y = jax.nn.relu(_bn_train(y @ params["wd1"].T + params["bd1"],
                              params["g1"], params["be1"], (0,)))
    y = jax.nn.relu(y @ params["wd2"].T + params["bd2"])
    return jax.nn.log_softmax(y, axis=-1)


if __name__ == "__main__":
    x = jax.random.normal(jax.random.PRNGKey(0), (2, 1, 28, 28), dtype=F32)
    params = init_params(jax.random.PRNGKey(42))

    out = jax.block_until_ready(jax.jit(net_forward)(params, x))

    assert out.shape == (2, 10)
    assert bool(jnp.all(jnp.isfinite(out)))
    # log_softmax rows must sum to ~1 in probability space
    assert bool(jnp.allclose(jnp.sum(jnp.exp(out), axis=-1), 1.0, atol=1e-4))

    # numerical check against the pure-JAX reference of the same module
    ref = jax.block_until_ready(jax.jit(net_reference)(params, x))
    assert bool(jnp.allclose(out, ref, atol=2e-3, rtol=2e-3)), (
        "max abs err %g" % float(jnp.max(jnp.abs(out - ref))))

    print("KERNEL_OK")
</pallas_src>

<mosaic_0001>
module attributes {stable_mosaic.version = 11 : i64} {
  func.func @_net_fused_kernel(%arg0: memref<48x140xf32, #tpu.memory_space<vmem>>, %arg1: memref<140x240xf32, #tpu.memory_space<vmem>>, %arg2: memref<1x120xf32, #tpu.memory_space<vmem>>, %arg3: memref<5x120x160xf32, #tpu.memory_space<vmem>>, %arg4: memref<1x160xf32, #tpu.memory_space<vmem>>, %arg5: memref<80x47xf32, #tpu.memory_space<vmem>>, %arg6: memref<230x120xf32, #tpu.memory_space<vmem>>, %arg7: memref<8x15xf32, #tpu.memory_space<vmem>>, %arg8: memref<140x80xf32, #tpu.memory_space<vmem>>, %arg9: memref<160x20xf32, #tpu.memory_space<vmem>>, %arg10: memref<20x160xf32, #tpu.memory_space<vmem>>, %arg11: memref<1x20xf32, #tpu.memory_space<vmem>>, %arg12: memref<1x20xf32, #tpu.memory_space<vmem>>, %arg13: memref<4x80x50xf32, #tpu.memory_space<vmem>>, %arg14: memref<1x50xf32, #tpu.memory_space<vmem>>, %arg15: memref<1x50xf32, #tpu.memory_space<vmem>>, %arg16: memref<1x50xf32, #tpu.memory_space<vmem>>, %arg17: memref<50x10xf32, #tpu.memory_space<vmem>>, %arg18: memref<1x10xf32, #tpu.memory_space<vmem>>, %arg19: memref<2x10xf32, #tpu.memory_space<vmem>>) attributes {dimension_semantics = [], scalar_prefetch = 0 : i64, scratch_operands = 0 : i64, tpu.core_type = #tpu.core_type<tc>} {
    %c0 = arith.constant 0 : index
    %c0_0 = arith.constant 0 : index
    %0 = vector.load %arg0[%c0, %c0_0] : memref<48x140xf32, #tpu.memory_space<vmem>>, vector<48x140xf32>
    %c0_1 = arith.constant 0 : index
    %c0_2 = arith.constant 0 : index
    %1 = vector.load %arg1[%c0_1, %c0_2] : memref<140x240xf32, #tpu.memory_space<vmem>>, vector<140x240xf32>
    %cst = arith.constant dense<0.000000e+00> : vector<48x240xf32>
    %2 = tpu.matmul %0, %1, %cst {dimension_numbers = #tpu.dot_dimension_numbers<[1], [0], [0], [1], [0, 0, 1, 1], [], []>} : vector<48x140xf32>, vector<140x240xf32>, vector<48x240xf32> -> vector<48x240xf32>
    %3 = vector.extract_strided_slice %2 {offsets = [0, 0], sizes = [47, 240], strides = [1, 1]} : vector<48x240xf32> to vector<47x240xf32>
    %4 = vector.extract_strided_slice %2 {offsets = [1, 0], sizes = [47, 240], strides = [1, 1]} : vector<48x240xf32> to vector<47x240xf32>
    %5 = arith.maximumf %3, %4 : vector<47x240xf32>
    %c0_3 = arith.constant 0 : index
    %c0_4 = arith.constant 0 : index
    %6 = vector.load %arg5[%c0_3, %c0_4] : memref<80x47xf32, #tpu.memory_space<vmem>>, vector<80x47xf32>
    %cst_5 = arith.constant dense<0.000000e+00> : vector<80x240xf32>
    %7 = tpu.matmul %6, %5, %cst_5 {dimension_numbers = #tpu.dot_dimension_numbers<[1], [0], [0], [1], [0, 0, 1, 1], [], []>} : vector<80x47xf32>, vector<47x240xf32>, vector<80x240xf32> -> vector<80x240xf32>
    %8 = vector.extract_strided_slice %7 {offsets = [0, 0], sizes = [80, 230], strides = [1, 1]} : vector<80x240xf32> to vector<80x230xf32>
    %9 = vector.extract_strided_slice %7 {offsets = [0, 10], sizes = [80, 230], strides = [1, 1]} : vector<80x240xf32> to vector<80x230xf32>
    %10 = arith.maximumf %8, %9 : vector<80x230xf32>
    %c0_6 = arith.constant 0 : index
    %c0_7 = arith.constant 0 : index
    %11 = vector.load %arg6[%c0_6, %c0_7] : memref<230x120xf32, #tpu.memory_space<vmem>>, vector<230x120xf32>
    %cst_8 = arith.constant dense<0.000000e+00> : vector<80x120xf32>
    %12 = tpu.matmul %10, %11, %cst_8 {dimension_numbers = #tpu.dot_dimension_numbers<[1], [0], [0], [1], [0, 0, 1, 1], [], []>} : vector<80x230xf32>, vector<230x120xf32>, vector<80x120xf32> -> vector<80x120xf32>
    %c0_9 = arith.constant 0 : index
    %c0_10 = arith.constant 0 : index
    %13 = vector.load %arg2[%c0_9, %c0_10] : memref<1x120xf32, #tpu.memory_space<vmem>>, vector<1x120xf32>
    %14 = vector.broadcast %13 : vector<1x120xf32> to vector<80x120xf32>
    %15 = arith.addf %12, %14 : vector<80x120xf32>
    %cst_11 = arith.constant 0.000000e+00 : f32
    %16 = vector.broadcast %cst_11 : f32 to vector<80x120xf32>
    %17 = arith.maximumf %15, %16 : vector<80x120xf32>
    %18 = vector.extract_strided_slice %17 {offsets = [0, 0], sizes = [16, 120], strides = [1, 1]} : vector<80x120xf32> to vector<16x120xf32>
    %c0_12 = arith.constant 0 : index
    %c0_13 = arith.constant 0 : index
    %c0_14 = arith.constant 0 : index
    %19 = vector.load %arg3[%c0_12, %c0_13, %c0_14] : memref<5x120x160xf32, #tpu.memory_space<vmem>>, vector<1x120x160xf32>
    %20 = vector.shape_cast %19 : vector<1x120x160xf32> to vector<120x160xf32>
    %cst_15 = arith.constant dense<0.000000e+00> : vector<16x160xf32>
    %21 = tpu.matmul %18, %20, %cst_15 {dimension_numbers = #tpu.dot_dimension_numbers<[1], [0], [0], [1], [0, 0, 1, 1], [], []>} : vector<16x120xf32>, vector<120x160xf32>, vector<16x160xf32> -> vector<16x160xf32>
    %22 = vector.extract_strided_slice %17 {offsets = [16, 0], sizes = [16, 120], strides = [1, 1]} : vector<80x120xf32> to vector<16x120xf32>
    %c1 = arith.constant 1 : index
    %c0_16 = arith.constant 0 : index
    %c0_17 = arith.constant 0 : index
    %23 = vector.load %arg3[%c1, %c0_16, %c0_17] : memref<5x120x160xf32, #tpu.memory_space<vmem>>, vector<1x120x160xf32>
    %24 = vector.shape_cast %23 : vector<1x120x160xf32> to vector<120x160xf32>
    %cst_18 = arith.constant dense<0.000000e+00> : vector<16x160xf32>
    %25 = tpu.matmul %22, %24, %cst_18 {dimension_numbers = #tpu.dot_dimension_numbers<[1], [0], [0], [1], [0, 0, 1, 1], [], []>} : vector<16x120xf32>, vector<120x160xf32>, vector<16x160xf32> -> vector<16x160xf32>
    %26 = arith.addf %21, %25 : vector<16x160xf32>
    %27 = vector.extract_strided_slice %17 {offsets = [32, 0], sizes = [16, 120], strides = [1, 1]} : vector<80x120xf32> to vector<16x120xf32>
    %c2 = arith.constant 2 : index
    %c0_19 = arith.constant 0 : index
    %c0_20 = arith.constant 0 : index
    %28 = vector.load %arg3[%c2, %c0_19, %c0_20] : memref<5x120x160xf32, #tpu.memory_space<vmem>>, vector<1x120x160xf32>
    %29 = vector.shape_cast %28 : vector<1x120x160xf32> to vector<120x160xf32>
    %cst_21 = arith.constant dense<0.000000e+00> : vector<16x160xf32>
    %30 = tpu.matmul %27, %29, %cst_21 {dimension_numbers = #tpu.dot_dimension_numbers<[1], [0], [0], [1], [0, 0, 1, 1], [], []>} : vector<16x120xf32>, vector<120x160xf32>, vector<16x160xf32> -> vector<16x160xf32>
    %31 = arith.addf %26, %30 : vector<16x160xf32>
    %32 = vector.extract_strided_slice %17 {offsets = [48, 0], sizes = [16, 120], strides = [1, 1]} : vector<80x120xf32> to vector<16x120xf32>
    %c3 = arith.constant 3 : index
    %c0_22 = arith.constant 0 : index
    %c0_23 = arith.constant 0 : index
    %33 = vector.load %arg3[%c3, %c0_22, %c0_23] : memref<5x120x160xf32, #tpu.memory_space<vmem>>, vector<1x120x160xf32>
    %34 = vector.shape_cast %33 : vector<1x120x160xf32> to vector<120x160xf32>
    %cst_24 = arith.constant dense<0.000000e+00> : vector<16x160xf32>
    %35 = tpu.matmul %32, %34, %cst_24 {dimension_numbers = #tpu.dot_dimension_numbers<[1], [0], [0], [1], [0, 0, 1, 1], [], []>} : vector<16x120xf32>, vector<120x160xf32>, vector<16x160xf32> -> vector<16x160xf32>
    %36 = arith.addf %31, %35 : vector<16x160xf32>
    %37 = vector.extract_strided_slice %17 {offsets = [64, 0], sizes = [16, 120], strides = [1, 1]} : vector<80x120xf32> to vector<16x120xf32>
    %c4 = arith.constant 4 : index
    %c0_25 = arith.constant 0 : index
    %c0_26 = arith.constant 0 : index
    %38 = vector.load %arg3[%c4, %c0_25, %c0_26] : memref<5x120x160xf32, #tpu.memory_space<vmem>>, vector<1x120x160xf32>
    %39 = vector.shape_cast %38 : vector<1x120x160xf32> to vector<120x160xf32>
    %cst_27 = arith.constant dense<0.000000e+00> : vector<16x160xf32>
    %40 = tpu.matmul %37, %39, %cst_27 {dimension_numbers = #tpu.dot_dimension_numbers<[1], [0], [0], [1], [0, 0, 1, 1], [], []>} : vector<16x120xf32>, vector<120x160xf32>, vector<16x160xf32> -> vector<16x160xf32>
    %41 = arith.addf %36, %40 : vector<16x160xf32>
    %c0_28 = arith.constant 0 : index
    %c0_29 = arith.constant 0 : index
    %42 = vector.load %arg4[%c0_28, %c0_29] : memref<1x160xf32, #tpu.memory_space<vmem>>, vector<1x160xf32>
    %43 = vector.broadcast %42 : vector<1x160xf32> to vector<16x160xf32>
    %44 = arith.addf %41, %43 : vector<16x160xf32>
    %cst_30 = arith.constant dense<0.000000e+00> : vector<160xf32>
    %45 = vector.multi_reduction <add>, %44, %cst_30 [0] : vector<16x160xf32> to vector<160xf32>
    %46 = vector.shape_cast %45 : vector<160xf32> to vector<1x160xf32>
    %c0_31 = arith.constant 0 : index
    %c0_32 = arith.constant 0 : index
    %47 = vector.load %arg9[%c0_31, %c0_32] : memref<160x20xf32, #tpu.memory_space<vmem>>, vector<160x20xf32>
    %cst_33 = arith.constant dense<0.000000e+00> : vector<1x20xf32>
    %48 = tpu.matmul %46, %47, %cst_33 {dimension_numbers = #tpu.dot_dimension_numbers<[1], [0], [0], [1], [0, 0, 1, 1], [], []>} : vector<1x160xf32>, vector<160x20xf32>, vector<1x20xf32> -> vector<1x20xf32>
    %49 = arith.mulf %44, %44 : vector<16x160xf32>
    %cst_34 = arith.constant dense<0.000000e+00> : vector<160xf32>
    %50 = vector.multi_reduction <add>, %49, %cst_34 [0] : vector<16x160xf32> to vector<160xf32>
    %51 = vector.shape_cast %50 : vector<160xf32> to vector<1x160xf32>
    %c0_35 = arith.constant 0 : index
    %c0_36 = arith.constant 0 : index
    %52 = vector.load %arg9[%c0_35, %c0_36] : memref<160x20xf32, #tpu.memory_space<vmem>>, vector<160x20xf32>
    %cst_37 = arith.constant dense<0.000000e+00> : vector<1x20xf32>
    %53 = tpu.matmul %51, %52, %cst_37 {dimension_numbers = #tpu.dot_dimension_numbers<[1], [0], [0], [1], [0, 0, 1, 1], [], []>} : vector<1x160xf32>, vector<160x20xf32>, vector<1x20xf32> -> vector<1x20xf32>
    %cst_38 = arith.constant 1.280000e+02 : f32
    %54 = vector.broadcast %cst_38 : f32 to vector<1x20xf32>
    %55 = arith.divf %48, %54 : vector<1x20xf32>
    %cst_39 = arith.constant 1.280000e+02 : f32
    %56 = vector.broadcast %cst_39 : f32 to vector<1x20xf32>
    %57 = arith.divf %53, %56 : vector<1x20xf32>
    %58 = arith.mulf %55, %55 : vector<1x20xf32>
    %59 = arith.subf %57, %58 : vector<1x20xf32>
    %cst_40 = arith.constant 0.000000e+00 : f32
    %60 = vector.broadcast %cst_40 : f32 to vector<1x20xf32>
    %61 = arith.maximumf %59, %60 : vector<1x20xf32>
    %c0_41 = arith.constant 0 : index
    %c0_42 = arith.constant 0 : index
    %62 = vector.load %arg11[%c0_41, %c0_42] : memref<1x20xf32, #tpu.memory_space<vmem>>, vector<1x20xf32>
    %cst_43 = arith.constant 9.99999974E-6 : f32
    %63 = vector.broadcast %cst_43 : f32 to vector<1x20xf32>
    %64 = arith.addf %61, %63 : vector<1x20xf32>
    %65 = math.rsqrt %64 : vector<1x20xf32>
    %66 = arith.mulf %62, %65 : vector<1x20xf32>
    %c0_44 = arith.constant 0 : index
    %c0_45 = arith.constant 0 : index
    %67 = vector.load %arg12[%c0_44, %c0_45] : memref<1x20xf32, #tpu.memory_space<vmem>>, vector<1x20xf32>
    %68 = arith.mulf %55, %66 : vector<1x20xf32>
    %69 = arith.subf %67, %68 : vector<1x20xf32>
    %c0_46 = arith.constant 0 : index
    %c0_47 = arith.constant 0 : index
    %70 = vector.load %arg10[%c0_46, %c0_47] : memref<20x160xf32, #tpu.memory_space<vmem>>, vector<20x160xf32>
    %cst_48 = arith.constant dense<0.000000e+00> : vector<1x160xf32>
    %71 = tpu.matmul %66, %70, %cst_48 {dimension_numbers = #tpu.dot_dimension_numbers<[1], [0], [0], [1], [0, 0, 1, 1], [], []>} : vector<1x20xf32>, vector<20x160xf32>, vector<1x160xf32> -> vector<1x160xf32>
    %c0_49 = arith.constant 0 : index
    %c0_50 = arith.constant 0 : index
    %72 = vector.load %arg10[%c0_49, %c0_50] : memref<20x160xf32, #tpu.memory_space<vmem>>, vector<20x160xf32>
    %cst_51 = arith.constant dense<0.000000e+00> : vector<1x160xf32>
    %73 = tpu.matmul %69, %72, %cst_51 {dimension_numbers = #tpu.dot_dimension_numbers<[1], [0], [0], [1], [0, 0, 1, 1], [], []>} : vector<1x20xf32>, vector<20x160xf32>, vector<1x160xf32> -> vector<1x160xf32>
    %74 = vector.broadcast %71 : vector<1x160xf32> to vector<16x160xf32>
    %75 = arith.mulf %44, %74 : vector<16x160xf32>
    %76 = vector.broadcast %73 : vector<1x160xf32> to vector<16x160xf32>
    %77 = arith.addf %75, %76 : vector<16x160xf32>
    %78 = vector.extract_strided_slice %77 {offsets = [0, 0], sizes = [15, 160], strides = [1, 1]} : vector<16x160xf32> to vector<15x160xf32>
    %79 = vector.extract_strided_slice %77 {offsets = [1, 0], sizes = [15, 160], strides = [1, 1]} : vector<16x160xf32> to vector<15x160xf32>
    %80 = arith.maximumf %78, %79 : vector<15x160xf32>
    %c0_52 = arith.constant 0 : index
    %c0_53 = arith.constant 0 : index
    %81 = vector.load %arg7[%c0_52, %c0_53] : memref<8x15xf32, #tpu.memory_space<vmem>>, vector<8x15xf32>
    %cst_54 = arith.constant dense<0.000000e+00> : vector<8x160xf32>
    %82 = tpu.matmul %81, %80, %cst_54 {dimension_numbers = #tpu.dot_dimension_numbers<[1], [0], [0], [1], [0, 0, 1, 1], [], []>} : vector<8x15xf32>, vector<15x160xf32>, vector<8x160xf32> -> vector<8x160xf32>
    %83 = vector.extract_strided_slice %82 {offsets = [0, 0], sizes = [8, 140], strides = [1, 1]} : vector<8x160xf32> to vector<8x140xf32>
    %84 = vector.extract_strided_slice %82 {offsets = [0, 20], sizes = [8, 140], strides = [1, 1]} : vector<8x160xf32> to vector<8x140xf32>
    %85 = arith.maximumf %83, %84 : vector<8x140xf32>
    %c0_55 = arith.constant 0 : index
    %c0_56 = arith.constant 0 : index
    %86 = vector.load %arg8[%c0_55, %c0_56] : memref<140x80xf32, #tpu.memory_space<vmem>>, vector<140x80xf32>
    %cst_57 = arith.constant dense<0.000000e+00> : vector<8x80xf32>
    %87 = tpu.matmul %85, %86, %cst_57 {dimension_numbers = #tpu.dot_dimension_numbers<[1], [0], [0], [1], [0, 0, 1, 1], [], []>} : vector<8x140xf32>, vector<140x80xf32>, vector<8x80xf32> -> vector<8x80xf32>
    %cst_58 = arith.constant 0.000000e+00 : f32
    %88 = vector.broadcast %cst_58 : f32 to vector<8x80xf32>
    %89 = arith.maximumf %87, %88 : vector<8x80xf32>
    %c0_59 = arith.constant 0 : index
    %c0_60 = arith.constant 0 : index
    %90 = vector.load %arg14[%c0_59, %c0_60] : memref<1x50xf32, #tpu.memory_space<vmem>>, vector<1x50xf32>
    %91 = vector.extract_strided_slice %89 {offsets = [0, 0], sizes = [2, 80], strides = [1, 1]} : vector<8x80xf32> to vector<2x80xf32>
    %c0_61 = arith.constant 0 : index
    %c0_62 = arith.constant 0 : index
    %c0_63 = arith.constant 0 : index
    %92 = vector.load %arg13[%c0_61, %c0_62, %c0_63] : memref<4x80x50xf32, #tpu.memory_space<vmem>>, vector<1x80x50xf32>
    %93 = vector.shape_cast %92 : vector<1x80x50xf32> to vector<80x50xf32>
    %cst_64 = arith.constant dense<0.000000e+00> : vector<2x50xf32>
    %94 = tpu.matmul %91, %93, %cst_64 {dimension_numbers = #tpu.dot_dimension_numbers<[1], [0], [0], [1], [0, 0, 1, 1], [], []>} : vector<2x80xf32>, vector<80x50xf32>, vector<2x50xf32> -> vector<2x50xf32>
    %95 = vector.broadcast %90 : vector<1x50xf32> to vector<2x50xf32>
    %96 = arith.addf %95, %94 : vector<2x50xf32>
    %97 = vector.extract_strided_slice %89 {offsets = [2, 0], sizes = [2, 80], strides = [1, 1]} : vector<8x80xf32> to vector<2x80xf32>
    %c1_65 = arith.constant 1 : index
    %c0_66 = arith.constant 0 : index
    %c0_67 = arith.constant 0 : index
    %98 = vector.load %arg13[%c1_65, %c0_66, %c0_67] : memref<4x80x50xf32, #tpu.memory_space<vmem>>, vector<1x80x50xf32>
    %99 = vector.shape_cast %98 : vector<1x80x50xf32> to vector<80x50xf32>
    %cst_68 = arith.constant dense<0.000000e+00> : vector<2x50xf32>
    %100 = tpu.matmul %97, %99, %cst_68 {dimension_numbers = #tpu.dot_dimension_numbers<[1], [0], [0], [1], [0, 0, 1, 1], [], []>} : vector<2x80xf32>, vector<80x50xf32>, vector<2x50xf32> -> vector<2x50xf32>
    %101 = arith.addf %96, %100 : vector<2x50xf32>
    %102 = vector.extract_strided_slice %89 {offsets = [4, 0], sizes = [2, 80], strides = [1, 1]} : vector<8x80xf32> to vector<2x80xf32>
    %c2_69 = arith.constant 2 : index
    %c0_70 = arith.constant 0 : index
    %c0_71 = arith.constant 0 : index
    %103 = vector.load %arg13[%c2_69, %c0_70, %c0_71] : memref<4x80x50xf32, #tpu.memory_space<vmem>>, vector<1x80x50xf32>
    %104 = vector.shape_cast %103 : vector<1x80x50xf32> to vector<80x50xf32>
    %cst_72 = arith.constant dense<0.000000e+00> : vector<2x50xf32>
    %105 = tpu.matmul %102, %104, %cst_72 {dimension_numbers = #tpu.dot_dimension_numbers<[1], [0], [0], [1], [0, 0, 1, 1], [], []>} : vector<2x80xf32>, vector<80x50xf32>, vector<2x50xf32> -> vector<2x50xf32>
    %106 = arith.addf %101, %105 : vector<2x50xf32>
    %107 = vector.extract_strided_slice %89 {offsets = [6, 0], sizes = [2, 80], strides = [1, 1]} : vector<8x80xf32> to vector<2x80xf32>
    %c3_73 = arith.constant 3 : index
    %c0_74 = arith.constant 0 : index
    %c0_75 = arith.constant 0 : index
    %108 = vector.load %arg13[%c3_73, %c0_74, %c0_75] : memref<4x80x50xf32, #tpu.memory_space<vmem>>, vector<1x80x50xf32>
    %109 = vector.shape_cast %108 : vector<1x80x50xf32> to vector<80x50xf32>
    %cst_76 = arith.constant dense<0.000000e+00> : vector<2x50xf32>
    %110 = tpu.matmul %107, %109, %cst_76 {dimension_numbers = #tpu.dot_dimension_numbers<[1], [0], [0], [1], [0, 0, 1, 1], [], []>} : vector<2x80xf32>, vector<80x50xf32>, vector<2x50xf32> -> vector<2x50xf32>
    %111 = arith.addf %106, %110 : vector<2x50xf32>
    %cst_77 = arith.constant dense<0.000000e+00> : vector<50xf32>
    %112 = vector.multi_reduction <add>, %111, %cst_77 [0] : vector<2x50xf32> to vector<50xf32>
    %113 = vector.shape_cast %112 : vector<50xf32> to vector<1x50xf32>
    %cst_78 = arith.constant 2.000000e+00 : f32
    %114 = vector.broadcast %cst_78 : f32 to vector<1x50xf32>
    %115 = arith.divf %113, %114 : vector<1x50xf32>
    %116 = vector.broadcast %115 : vector<1x50xf32> to vector<2x50xf32>
    %117 = arith.subf %111, %116 : vector<2x50xf32>
    %118 = arith.mulf %117, %117 : vector<2x50xf32>
    %cst_79 = arith.constant dense<0.000000e+00> : vector<50xf32>
    %119 = vector.multi_reduction <add>, %118, %cst_79 [0] : vector<2x50xf32> to vector<50xf32>
    %120 = vector.shape_cast %119 : vector<50xf32> to vector<1x50xf32>
    %cst_80 = arith.constant 2.000000e+00 : f32
    %121 = vector.broadcast %cst_80 : f32 to vector<1x50xf32>
    %122 = arith.divf %120, %121 : vector<1x50xf32>
    %123 = vector.broadcast %115 : vector<1x50xf32> to vector<2x50xf32>
    %124 = arith.subf %111, %123 : vector<2x50xf32>
    %cst_81 = arith.constant 9.99999974E-6 : f32
    %125 = vector.broadcast %cst_81 : f32 to vector<1x50xf32>
    %126 = arith.addf %122, %125 : vector<1x50xf32>
    %127 = math.rsqrt %126 : vector<1x50xf32>
    %128 = vector.broadcast %127 : vector<1x50xf32> to vector<2x50xf32>
    %129 = arith.mulf %124, %128 : vector<2x50xf32>
    %c0_82 = arith.constant 0 : index
    %c0_83 = arith.constant 0 : index
    %130 = vector.load %arg15[%c0_82, %c0_83] : memref<1x50xf32, #tpu.memory_space<vmem>>, vector<1x50xf32>
    %131 = vector.broadcast %130 : vector<1x50xf32> to vector<2x50xf32>
    %132 = arith.mulf %129, %131 : vector<2x50xf32>
    %c0_84 = arith.constant 0 : index
    %c0_85 = arith.constant 0 : index
    %133 = vector.load %arg16[%c0_84, %c0_85] : memref<1x50xf32, #tpu.memory_space<vmem>>, vector<1x50xf32>
    %134 = vector.broadcast %133 : vector<1x50xf32> to vector<2x50xf32>
    %135 = arith.addf %132, %134 : vector<2x50xf32>
    %cst_86 = arith.constant 0.000000e+00 : f32
    %136 = vector.broadcast %cst_86 : f32 to vector<2x50xf32>
    %137 = arith.maximumf %135, %136 : vector<2x50xf32>
    %c0_87 = arith.constant 0 : index
    %c0_88 = arith.constant 0 : index
    %138 = vector.load %arg17[%c0_87, %c0_88] : memref<50x10xf32, #tpu.memory_space<vmem>>, vector<50x10xf32>
    %cst_89 = arith.constant dense<0.000000e+00> : vector<2x10xf32>
    %139 = tpu.matmul %137, %138, %cst_89 {dimension_numbers = #tpu.dot_dimension_numbers<[1], [0], [0], [1], [0, 0, 1, 1], [], []>} : vector<2x50xf32>, vector<50x10xf32>, vector<2x10xf32> -> vector<2x10xf32>
    %c0_90 = arith.constant 0 : index
    %c0_91 = arith.constant 0 : index
    %140 = vector.load %arg18[%c0_90, %c0_91] : memref<1x10xf32, #tpu.memory_space<vmem>>, vector<1x10xf32>
    %141 = vector.broadcast %140 : vector<1x10xf32> to vector<2x10xf32>
    %142 = arith.addf %139, %141 : vector<2x10xf32>
    %cst_92 = arith.constant 0.000000e+00 : f32
    %143 = vector.broadcast %cst_92 : f32 to vector<2x10xf32>
    %144 = arith.maximumf %142, %143 : vector<2x10xf32>
    %cst_93 = arith.constant dense<0xFF800000> : vector<2xf32>
    %145 = vector.multi_reduction <maximumf>, %144, %cst_93 [1] : vector<2x10xf32> to vector<2xf32>
    %146 = vector.shape_cast %145 : vector<2xf32> to vector<2x1xf32>
    %147 = vector.broadcast %146 : vector<2x1xf32> to vector<2x10xf32>
    %148 = arith.subf %144, %147 : vector<2x10xf32>
    %149 = math.exp %148 : vector<2x10xf32>
    %cst_94 = arith.constant dense<0.000000e+00> : vector<2xf32>
    %150 = vector.multi_reduction <add>, %149, %cst_94 [1] : vector<2x10xf32> to vector<2xf32>
    %151 = vector.shape_cast %150 : vector<2xf32> to vector<2x1xf32>
    %152 = math.log %151 : vector<2x1xf32>
    %153 = vector.broadcast %152 : vector<2x1xf32> to vector<2x10xf32>
    %154 = arith.subf %148, %153 : vector<2x10xf32>
    %c0_95 = arith.constant 0 : index
    %c0_96 = arith.constant 0 : index
    %155 = vector.load %arg19[%c0_95, %c0_96] : memref<2x10xf32, #tpu.memory_space<vmem>>, vector<2x10xf32>
    tpu.vector_store %arg19[%c0_95, %c0_96], %154 {strides = array<i32>} : memref<2x10xf32, #tpu.memory_space<vmem>>, vector<2x10xf32>,
    return
  }
}

</mosaic_0001>

<llo_original>
// kernel: tile.13
$region0: #{tile.13}
  #allocation0 [shape = 's32[1]{0}', space=sflag, size = 0x4, scoped, tag = 'scoped memory for tile.13']
  %s0 = inlined_call_operand.vmem [shape: f32[10], index: 0, kind: input, shape index: {}]
  %s1 = inlined_call_operand.vmem [shape: f32[12,10], index: 1, kind: output, shape index: {}]
  // Predicated region
  $region2: #{tile.13} parent=0 // pred_check
    _
  $region3: #{tile.13} parent=0 // pred_check_branch
    %3 = sbr.rel (0) target = $region5
  $region4: #{tile.13} parent=0 // pred_region
    _
  $region5: #{tile.13} parent=0 // pred_fallthru
    _
  %v4 = vld [vmem:[%s0] ss:$0 sm:$0xff]
  %5 = vst [vmem:[%s1] sm:$0xff] %v4
  %s6 = scalar_lea.vmem %s1, 8
  %7 = vst [vmem:[%s6] sm:$0xff] %v4

// kernel: tile.14
$region0: #{tile.14}
  %s0 = inlined_call_operand.vmem [shape: f32[12,10], index: 0, kind: input, shape index: {}]
  %s1 = inlined_call_operand.vmem [shape: f32[1,120], index: 1, kind: output, shape index: {}]
  $region1: #{tile.14} parent=0
    #allocation0 [shape = 'u8[4096]{0}', space=vmem, size = 0x1000, scoped, tag = 'scoped mem for output reshape']
    %v2 = vld [vmem:[%s0] sm:$0x1]
    %vm3 = vcmask 80896
    %4 = vst.msk [vmem:[#allocation0] sm:$0x1] %vm3, %v2
    %s5 = scalar_lea.vmem %s0, 11
    %v6 = vld [vmem:[%s5] sm:$0x1]
    %7 = vrot.lane.b32.xlu0 %v6, 110
    %v8 = vpop.permute.xlu0 %7
    %vm9 = vcmask 982896
    %10 = vst.msk [vmem:[#allocation0] sm:$0x1] %vm9, %v8
    %s11 = scalar_lea.vmem %s0, 10
    %v12 = vld [vmem:[%s11] sm:$0x1]
    %13 = vrot.lane.b32.xlu0 %v12, 100
    %v14 = vpop.permute.xlu0 %13
    %vm15 = vcmask 900896
    %16 = vst.msk [vmem:[#allocation0] sm:$0x1] %vm15, %v14
    %s17 = scalar_lea.vmem %s0, 9
    %v18 = vld [vmem:[%s17] sm:$0x1]
    %19 = vrot.lane.b32.xlu0 %v18, 90
    %v20 = vpop.permute.xlu0 %19
    %vm21 = vcmask 818896
    %22 = vst.msk [vmem:[#allocation0] sm:$0x1] %vm21, %v20
    %s23 = scalar_lea.vmem %s0, 8
    %v24 = vld [vmem:[%s23] sm:$0x1]
    %25 = vrot.lane.b32.xlu0 %v24, 80
    %v26 = vpop.permute.xlu0 %25
    %vm27 = vcmask 736896
    %28 = vst.msk [vmem:[#allocation0] sm:$0x1] %vm27, %v26
    %s29 = scalar_lea.vmem %s0, 7
    %v30 = vld [vmem:[%s29] sm:$0x1]
    %31 = vrot.lane.b32.xlu0 %v30, 70
    %v32 = vpop.permute.xlu0 %31
    %vm33 = vcmask 654896
    %34 = vst.msk [vmem:[#allocation0] sm:$0x1] %vm33, %v32
    %s35 = scalar_lea.vmem %s0, 6
    %v36 = vld [vmem:[%s35] sm:$0x1]
    %37 = vrot.lane.b32.xlu0 %v36, 60
    %v38 = vpop.permute.xlu0 %37
    %vm39 = vcmask 572896
    %40 = vst.msk [vmem:[#allocation0] sm:$0x1] %vm39, %v38
    %s41 = scalar_lea.vmem %s0, 5
    %v42 = vld [vmem:[%s41] sm:$0x1]
    %43 = vrot.lane.b32.xlu0 %v42, 50
    %v44 = vpop.permute.xlu0 %43
    %vm45 = vcmask 490896
    %46 = vst.msk [vmem:[#allocation0] sm:$0x1] %vm45, %v44
    %s47 = scalar_lea.vmem %s0, 4
    %v48 = vld [vmem:[%s47] sm:$0x1]
    %49 = vrot.lane.b32.xlu0 %v48, 40
    %v50 = vpop.permute.xlu0 %49
    %vm51 = vcmask 408896
    %52 = vst.msk [vmem:[#allocation0] sm:$0x1] %vm51, %v50
    %s53 = scalar_lea.vmem %s0, 3
    %v54 = vld [vmem:[%s53] sm:$0x1]
    %55 = vrot.lane.b32.xlu0 %v54, 30
    %v56 = vpop.permute.xlu0 %55
    %vm57 = vcmask 326896
    %58 = vst.msk [vmem:[#allocation0] sm:$0x1] %vm57, %v56
    %s59 = scalar_lea.vmem %s0, 2
    %v60 = vld [vmem:[%s59] sm:$0x1]
    %61 = vrot.lane.b32.xlu0 %v60, 20
    %v62 = vpop.permute.xlu0 %61
    %vm63 = vcmask 244896
    %64 = vst.msk [vmem:[#allocation0] sm:$0x1] %vm63, %v62
    %s65 = scalar_lea.vmem %s0, 1
    %v66 = vld [vmem:[%s65] sm:$0x1]
    %67 = vrot.lane.b32.xlu0 %v66, 10
    %v68 = vpop.permute.xlu0 %67
    %vm69 = vcmask 162896
    %70 = vst.msk [vmem:[#allocation0] sm:$0x1] %vm69, %v68
    %s72 = sshll.u32 1, 1
    %s73 = ssub.s32 %s72, 1
    %v75 = vld [vmem:[#allocation0] sm:%s73]
    %s76 = sshll.u32 1, 1
    %s77 = ssub.s32 %s76, 1
    %78 = vst [vmem:[%s1] sm:%s77] %v75

// kernel: tile.18
$region0: #{tile.18}
  #allocation0 [shape = 's32[1]{0}', space=sflag, size = 0x4, scoped, tag = 'scoped memory for tile.18']
  %s0 = inlined_call_operand.vmem [shape: f32[20], index: 0, kind: input, shape index: {}]
  %s1 = inlined_call_operand.vmem [shape: f32[8,20], index: 1, kind: output, shape index: {}]
  // Predicated region
  $region2: #{tile.18} parent=0 // pred_check
    _
  $region3: #{tile.18} parent=0 // pred_check_branch
    %3 = sbr.rel (0) target = $region5
  $region4: #{tile.18} parent=0 // pred_region
    _
  $region5: #{tile.18} parent=0 // pred_fallthru
    _
  %v4 = vld [vmem:[%s0] ss:$0 sm:$0xff]
  %5 = vst [vmem:[%s1] sm:$0xff] %v4

// kernel: tile.19
$region0: #{tile.19}
  %s0 = inlined_call_operand.vmem [shape: f32[8,20], index: 0, kind: input, shape index: {}]
  %s1 = inlined_call_operand.vmem [shape: f32[1,160], index: 1, kind: output, shape index: {}]
  $region1: #{tile.19} parent=0
    #allocation0 [shape = 'u8[8192]{0}', space=vmem, size = 0x2000, scoped, tag = 'scoped mem for output reshape']
    %v2 = vld [vmem:[%s0] sm:$0x1]
    %vm3 = vcmask 162816
    %4 = vst.msk [vmem:[#allocation0] sm:$0x1] %vm3, %v2
    %s5 = scalar_lea.vmem %s0, 6
    %v6 = vld [vmem:[%s5] sm:$0x1]
    %s7 = scalar_lea.vmem %s0, 6
    %v8 = vld [vmem:[%s7] sm:$0x1]
    %vm9 = vcmask 64512
    %v10 = vsel %vm9, %v8, %v6
    %11 = vrot.lane.b32.xlu0 %v10, 120
    %v12 = vpop.permute.xlu0 %11
    %vm13 = vcmask 97280
    %s14 = scalar_lea.vmem [#allocation0], 8
    %15 = vst.msk [vmem:[%s14] sm:$0x1] %vm13, %v12
    %vm16 = vcmask 1048512
    %17 = vst.msk [vmem:[#allocation0] sm:$0x1] %vm16, %v12
    %s18 = scalar_lea.vmem %s0, 5
    %v19 = vld [vmem:[%s18] sm:$0x1]
    %20 = vrot.lane.b32.xlu0 %v19, 100
    %v21 = vpop.permute.xlu0 %20
    %vm22 = vcmask 982816
    %23 = vst.msk [vmem:[#allocation0] sm:$0x1] %vm22, %v21
    %s24 = scalar_lea.vmem %s0, 4
    %v25 = vld [vmem:[%s24] sm:$0x1]
    %26 = vrot.lane.b32.xlu0 %v25, 80
    %v27 = vpop.permute.xlu0 %26
    %vm28 = vcmask 818816
    %29 = vst.msk [vmem:[#allocation0] sm:$0x1] %vm28, %v27
    %s30 = scalar_lea.vmem %s0, 3
    %v31 = vld [vmem:[%s30] sm:$0x1]
    %32 = vrot.lane.b32.xlu0 %v31, 60
    %v33 = vpop.permute.xlu0 %32
    %vm34 = vcmask 654816
    %35 = vst.msk [vmem:[#allocation0] sm:$0x1] %vm34, %v33
    %s36 = scalar_lea.vmem %s0, 2
    %v37 = vld [vmem:[%s36] sm:$0x1]
    %38 = vrot.lane.b32.xlu0 %v37, 40
    %v39 = vpop.permute.xlu0 %38
    %vm40 = vcmask 490816
    %41 = vst.msk [vmem:[#allocation0] sm:$0x1] %vm40, %v39
    %s42 = scalar_lea.vmem %s0, 1
    %v43 = vld [vmem:[%s42] sm:$0x1]
    %44 = vrot.lane.b32.xlu0 %v43, 20
    %v45 = vpop.permute.xlu0 %44
    %vm46 = vcmask 326816
    %47 = vst.msk [vmem:[#allocation0] sm:$0x1] %vm46, %v45
    %s48 = scalar_lea.vmem %s0, 7
    %v49 = vld [vmem:[%s48] sm:$0x1]
    %50 = vrot.lane.b32.xlu0 %v49, 12
    %v51 = vpop.permute.xlu0 %50
    %vm52 = vcmask 261216
    %s53 = scalar_lea.vmem [#allocation0], 8
    %54 = vst.msk [vmem:[%s53] sm:$0x1] %vm52, %v51
    %s56 = sshll.u32 1, 1
    %s57 = ssub.s32 %s56, 1
    %v59 = vld [vmem:[#allocation0] sm:%s57]
    %s60 = sshll.u32 1, 1
    %s61 = ssub.s32 %s60, 1
    %62 = vst [vmem:[%s1] sm:%s61] %v59
    %s63 = scalar_lea.vmem [#allocation0], 8
    %v64 = vld [vmem:[%s63] sm:%s57]
    %s65 = sshll.u32 1, 1
    %s66 = ssub.s32 %s65, 1
    %s67 = scalar_lea.vmem %s1, 1
    %68 = vst [vmem:[%s67] sm:%s66] %v64

// kernel: net_forward.1
$region0: #{net_forward.1}
  #allocation0 [shape = 'u32[]', space=smem, size = 0x4, offset = 0x4, fixed_abs, tag = 'smem constant byte address 0x4 - core index']
  #allocation1 [shape = 'u32[144,128]{1,0:T(1,128)}', space=vmem, size = 0x12000, scoped, tag = 'internal scratch']
  %s0 = inlined_call_operand.vmem [shape: f32[48,140], index: 0, kind: input, shape index: {}]
  %s1 = inlined_call_operand.vmem [shape: f32[140,240], index: 1, kind: input, shape index: {}]
  %s2 = inlined_call_operand.vmem [shape: f32[1,120], index: 2, kind: input, shape index: {}]
  %s3 = inlined_call_operand.vmem [shape: f32[5,120,160], index: 3, kind: input, shape index: {}]
  %s4 = inlined_call_operand.vmem [shape: f32[1,160], index: 4, kind: input, shape index: {}]
  %s5 = inlined_call_operand.vmem [shape: f32[80,47], index: 5, kind: input, shape index: {}]
  %s6 = inlined_call_operand.vmem [shape: f32[230,120], index: 6, kind: input, shape index: {}]
  %s7 = inlined_call_operand.vmem [shape: f32[8,15], index: 7, kind: input, shape index: {}]
  %s8 = inlined_call_operand.vmem [shape: f32[140,80], index: 8, kind: input, shape index: {}]
  %s9 = inlined_call_operand.vmem [shape: f32[160,20], index: 9, kind: input, shape index: {}]
  %s10 = inlined_call_operand.vmem [shape: f32[20,160], index: 10, kind: input, shape index: {}]
  %s11 = inlined_call_operand.vmem [shape: f32[1,20], index: 11, kind: input, shape index: {}]
  %s12 = inlined_call_operand.vmem [shape: f32[1,20], index: 12, kind: input, shape index: {}]
  %s13 = inlined_call_operand.vmem [shape: f32[4,80,50], index: 13, kind: input, shape index: {}]
  %s14 = inlined_call_operand.vmem [shape: f32[1,50], index: 14, kind: input, shape index: {}]
  %s15 = inlined_call_operand.vmem [shape: f32[1,50], index: 15, kind: input, shape index: {}]
  %s16 = inlined_call_operand.vmem [shape: f32[1,50], index: 16, kind: input, shape index: {}]
  %s17 = inlined_call_operand.vmem [shape: f32[50,10], index: 17, kind: input, shape index: {}]
  %s18 = inlined_call_operand.vmem [shape: f32[1,10], index: 18, kind: input, shape index: {}]
  %s19 = inlined_call_operand.hbm [shape: f32[2,10], index: 19, kind: output, shape index: {}]
  %s20 = sld [smem:[#allocation0]]
  $region86: #{net_forward.1} parent=0
    _
  %s22 = ssub.s32 1, %s20
  %s23 = scalar_select 0, %s22, %s20
  $region1: #{net_forward.1} parent=0
    #allocation2 [shape = 'u8[1024]{0}', space=vmem, size = 0x400, scoped, tag = 'output window, operand 0, single buffered']
    #allocation3 [shape = 's32[1]{0}', space=sflag, size = 0x4, scoped, tag = 'scoped memory for net_forward.1']
    %24 = vsyncpa [#allocation3], 0
    // Predicated region
    $region2: #{net_forward.1} parent=1 // pred_check
      _
    $region3: #{net_forward.1} parent=1 // pred_check_branch
      %26 = sbr.rel (0) target = $region5
    $region4: #{net_forward.1} parent=1 // pred_region
      _
    $region5: #{net_forward.1} parent=1 // pred_fallthru
      _
    // Predicated region
    $region6: #{net_forward.1} parent=1 // pred_check
      _
    $region7: #{net_forward.1} parent=1 // pred_check_branch
      %28 = sbr.rel (0) target = $region9
    $region8: #{net_forward.1} parent=1 // pred_region
      _
    $region9: #{net_forward.1} parent=1 // pred_fallthru
      _
    // Predicated region
    $region10: #{net_forward.1} parent=1 // pred_check
      _
    $region11: #{net_forward.1} parent=1 // pred_check_branch
      %30 = sbr.rel (0) target = $region13
    $region12: #{net_forward.1} parent=1 // pred_region
      _
    $region13: #{net_forward.1} parent=1 // pred_fallthru
      _
    // Predicated region
    $region14: #{net_forward.1} parent=1 // pred_check
      _
    $region15: #{net_forward.1} parent=1 // pred_check_branch
      %32 = sbr.rel (0) target = $region17
    $region16: #{net_forward.1} parent=1 // pred_region
      _
    $region17: #{net_forward.1} parent=1 // pred_fallthru
      _
    // Predicated region
    $region18: #{net_forward.1} parent=1 // pred_check
      _
    $region19: #{net_forward.1} parent=1 // pred_check_branch
      %34 = sbr.rel (0) target = $region21
    $region20: #{net_forward.1} parent=1 // pred_region
      _
    $region21: #{net_forward.1} parent=1 // pred_fallthru
      _
    // Predicated region
    $region22: #{net_forward.1} parent=1 // pred_check
      _
    $region23: #{net_forward.1} parent=1 // pred_check_branch
      %36 = sbr.rel (0) target = $region25
    $region24: #{net_forward.1} parent=1 // pred_region
      _
    $region25: #{net_forward.1} parent=1 // pred_fallthru
      _
    // Predicated region
    $region26: #{net_forward.1} parent=1 // pred_check
      _
    $region27: #{net_forward.1} parent=1 // pred_check_branch
      %38 = sbr.rel (0) target = $region29
    $region28: #{net_forward.1} parent=1 // pred_region
      _
    $region29: #{net_forward.1} parent=1 // pred_fallthru
      _
    // Predicated region
    $region30: #{net_forward.1} parent=1 // pred_check
      _
    $region31: #{net_forward.1} parent=1 // pred_check_branch
      %40 = sbr.rel (0) target = $region33
    $region32: #{net_forward.1} parent=1 // pred_region
      _
    $region33: #{net_forward.1} parent=1 // pred_fallthru
      _
    // Predicated region
    $region34: #{net_forward.1} parent=1 // pred_check
      _
    $region35: #{net_forward.1} parent=1 // pred_check_branch
      %42 = sbr.rel (0) target = $region37
    $region36: #{net_forward.1} parent=1 // pred_region
      _
    $region37: #{net_forward.1} parent=1 // pred_fallthru
      _
    // Predicated region
    $region38: #{net_forward.1} parent=1 // pred_check
      _
    $region39: #{net_forward.1} parent=1 // pred_check_branch
      %44 = sbr.rel (0) target = $region41
    $region40: #{net_forward.1} parent=1 // pred_region
      _
    $region41: #{net_forward.1} parent=1 // pred_fallthru
      _
    // Predicated region
    $region42: #{net_forward.1} parent=1 // pred_check
      _
    $region43: #{net_forward.1} parent=1 // pred_check_branch
      %46 = sbr.rel (0) target = $region45
    $region44: #{net_forward.1} parent=1 // pred_region
      _
    $region45: #{net_forward.1} parent=1 // pred_fallthru
      _
    // Predicated region
    $region46: #{net_forward.1} parent=1 // pred_check
      _
    $region47: #{net_forward.1} parent=1 // pred_check_branch
      %48 = sbr.rel (0) target = $region49
    $region48: #{net_forward.1} parent=1 // pred_region
      _
    $region49: #{net_forward.1} parent=1 // pred_fallthru
      _
    // Predicated region
    $region50: #{net_forward.1} parent=1 // pred_check
      _
    $region51: #{net_forward.1} parent=1 // pred_check_branch
      %50 = sbr.rel (0) target = $region53
    $region52: #{net_forward.1} parent=1 // pred_region
      _
    $region53: #{net_forward.1} parent=1 // pred_fallthru
      _
    // Predicated region
    $region54: #{net_forward.1} parent=1 // pred_check
      _
    $region55: #{net_forward.1} parent=1 // pred_check_branch
      %52 = sbr.rel (0) target = $region57
    $region56: #{net_forward.1} parent=1 // pred_region
      _
    $region57: #{net_forward.1} parent=1 // pred_fallthru
      _
    // Predicated region
    $region58: #{net_forward.1} parent=1 // pred_check
      _
    $region59: #{net_forward.1} parent=1 // pred_check_branch
      %54 = sbr.rel (0) target = $region61
    $region60: #{net_forward.1} parent=1 // pred_region
      _
    $region61: #{net_forward.1} parent=1 // pred_fallthru
      _
    // Predicated region
    $region62: #{net_forward.1} parent=1 // pred_check
      _
    $region63: #{net_forward.1} parent=1 // pred_check_branch
      %56 = sbr.rel (0) target = $region65
    $region64: #{net_forward.1} parent=1 // pred_region
      _
    $region65: #{net_forward.1} parent=1 // pred_fallthru
      _
    // Predicated region
    $region66: #{net_forward.1} parent=1 // pred_check
      _
    $region67: #{net_forward.1} parent=1 // pred_check_branch
      %58 = sbr.rel (0) target = $region69
    $region68: #{net_forward.1} parent=1 // pred_region
      _
    $region69: #{net_forward.1} parent=1 // pred_fallthru
      _
    // Predicated region
    $region70: #{net_forward.1} parent=1 // pred_check
      _
    $region71: #{net_forward.1} parent=1 // pred_check_branch
      %60 = sbr.rel (0) target = $region73
    $region72: #{net_forward.1} parent=1 // pred_region
      _
    $region73: #{net_forward.1} parent=1 // pred_fallthru
      _
    // Predicated region
    $region74: #{net_forward.1} parent=1 // pred_check
      _
    $region75: #{net_forward.1} parent=1 // pred_check_branch
      %62 = sbr.rel (0) target = $region77
    $region76: #{net_forward.1} parent=1 // pred_region
      _
    $region77: #{net_forward.1} parent=1 // pred_fallthru
      _
    %v63 = vld [vmem:[%s0] sm:$0xff]
    %v64 = vld [vmem:[%s0 + $0x8] sm:$0xff]
    %v65 = vld [vmem:[%s0 + $0x10] sm:$0xff]
    %v66 = vld [vmem:[%s0 + $0x18] sm:$0xff]
    %v67 = vld [vmem:[%s0 + $0x20] sm:$0xff]
    %v68 = vld [vmem:[%s0 + $0x28] sm:$0xff]
    %v69 = vld [vmem:[%s0 + $0x30] sm:$0xff]
    %v70 = vld [vmem:[%s0 + $0x38] sm:$0xff]
    %v71 = vld [vmem:[%s0 + $0x40] sm:$0xff]
    %v72 = vld [vmem:[%s0 + $0x48] sm:$0xff]
    %v73 = vld [vmem:[%s0 + $0x50] sm:$0xff]
    %v74 = vld [vmem:[%s0 + $0x58] sm:$0xff]
    %v75 = vld [vmem:[%s1] sm:$0xff]
    %v76 = vld [vmem:[%s1 + $0x8] sm:$0xff]
    %v77 = vld [vmem:[%s1 + $0x10] sm:$0xff]
    %v78 = vld [vmem:[%s1 + $0x18] sm:$0xff]
    %v79 = vld [vmem:[%s1 + $0x20] sm:$0xff]
    %v80 = vld [vmem:[%s1 + $0x28] sm:$0xff]
    %v81 = vld [vmem:[%s1 + $0x30] sm:$0xff]
    %v82 = vld [vmem:[%s1 + $0x38] sm:$0xff]
    %v83 = vld [vmem:[%s1 + $0x40] sm:$0xff]
    %v84 = vld [vmem:[%s1 + $0x48] sm:$0xff]
    %v85 = vld [vmem:[%s1 + $0x50] sm:$0xff]
    %v86 = vld [vmem:[%s1 + $0x58] sm:$0xff]
    %v87 = vld [vmem:[%s1 + $0x60] sm:$0xff]
    %v88 = vld [vmem:[%s1 + $0x68] sm:$0xff]
    %v89 = vld [vmem:[%s1 + $0x70] sm:$0xff]
    %v90 = vld [vmem:[%s1 + $0x78] sm:$0xff]
    %v91 = vld [vmem:[%s1 + $0x80] sm:$0xff]
    %v92 = vld [vmem:[%s1 + $0x88] sm:$0xff]
    %v93 = vld [vmem:[%s1 + $0x90] sm:$0xff]
    %v94 = vld [vmem:[%s1 + $0x98] sm:$0xff]
    %v95 = vld [vmem:[%s1 + $0xa0] sm:$0xff]
    %v96 = vld [vmem:[%s1 + $0xa8] sm:$0xff]
    %v97 = vld [vmem:[%s1 + $0xb0] sm:$0xff]
    %v98 = vld [vmem:[%s1 + $0xb8] sm:$0xff]
    %v99 = vld [vmem:[%s1 + $0xc0] sm:$0xff]
    %v100 = vld [vmem:[%s1 + $0xc8] sm:$0xff]
    %v101 = vld [vmem:[%s1 + $0xd0] sm:$0xff]
    %v102 = vld [vmem:[%s1 + $0xd8] sm:$0xff]
    %v103 = vld [vmem:[%s1 + $0xe0] sm:$0xff]
    %v104 = vld [vmem:[%s1 + $0xe8] sm:$0xff]
    %v105 = vld [vmem:[%s1 + $0xf0] sm:$0xff]
    %v106 = vld [vmem:[%s1 + $0xf8] sm:$0xff]
    %v107 = vld [vmem:[%s1 + $0x100] sm:$0xff]
    %v108 = vld [vmem:[%s1 + $0x108] sm:$0xff]
    %v109 = vld [vmem:[%s1 + $0x110] sm:$0xf]
    %v110 = vld [vmem:[%s1 + $0x118] sm:$0xf]
    %vm111 = vcmask 97280
    %v113 = vsel %vm111, %v64, 0
    %v116 = vsel %vm111, %v66, 0
    %v119 = vsel %vm111, %v68, 0
    %v122 = vsel %vm111, %v70, 0
    %v125 = vsel %vm111, %v72, 0
    %v128 = vsel %vm111, %v74, 0
    %vm130 = vcmask 1043456
    %v132 = vsel %vm130, %v109, 0
    %v135 = vsel %vm130, %v110, 0
    %137 = vmatprep.subr.mxu0 %v106
    %138 = vmatpush1.msra.mxu0 %v105
    %139 = vmatprep.subr.mxu0 %v104
    %140 = vmatpush1.msra.mxu0 %v103
    %141 = vmatprep.subr.mxu0 %v102
    %142 = vmatpush1.msra.mxu0 %v101
    %143 = vmatprep.subr.mxu0 %v100
    %144 = vmatpush1.msra.mxu0 %v99
    %145 = vmatprep.subr.mxu0 %v98
    %146 = vmatpush1.msra.mxu0 %v97
    %147 = vmatprep.subr.mxu0 %v96
    %148 = vmatpush1.msra.mxu0 %v95
    %149 = vmatprep.subr.mxu0 %v94
    %150 = vmatpush1.msra.mxu0 %v93
    %151 = vmatprep.subr.mxu0 %v92
    %152 = vmatpush1.msra.mxu0 %v91
    %153 = vmatprep.subr.mxu0 %v90
    %154 = vmatpush1.msra.mxu0 %v89
    %155 = vmatprep.subr.mxu0 %v88
    %156 = vmatpush1.msra.mxu0 %v87
    %157 = vmatprep.subr.mxu0 %v86
    %158 = vmatpush1.msra.mxu0 %v85
    %159 = vmatprep.subr.mxu0 %v84
    %160 = vmatpush1.msra.mxu0 %v83
    %161 = vmatprep.subr.mxu0 %v82
    %162 = vmatpush1.msra.mxu0 %v81
    %163 = vmatprep.subr.mxu0 %v80
    %164 = vmatpush1.msra.mxu0 %v79
    %165 = vmatprep.subr.mxu0 %v78
    %166 = vmatpush1.msra.mxu0 %v77
    %167 = vmatprep.subr.mxu0 %v76
    %168 = vmatpush1.msra.mxu0 %v75
    %169 = vmatprep.subr.mxu0 0.0
    %170 = vmatpush2.msra.mxu0 0.0
    %171 = vmatprep.subr.mxu0 0.0
    %172 = vmatpush2.msra.mxu0 0.0
    %173 = vmatprep.subr.mxu0 0.0
    %174 = vmatpush2.msra.mxu0 0.0
    %175 = vmatprep.subr.mxu0 0.0
    %176 = vmatpush2.msra.mxu0 0.0
    %177 = vmatprep.subr.mxu0 0.0
    %178 = vmatpush2.msra.mxu0 0.0
    %179 = vmatprep.subr.mxu0 0.0
    %180 = vmatpush2.msra.mxu0 0.0
    %181 = vmatprep.subr.mxu0 0.0
    %182 = vmatpush2.msra.mxu0 0.0
    %183 = vmatprep.subr.mxu0 0.0
    %184 = vmatpush2.msra.mxu0 0.0
    %185 = vmatprep.subr.mxu0 0.0
    %186 = vmatpush2.msra.mxu0 0.0
    %187 = vmatprep.subr.mxu0 0.0
    %188 = vmatpush2.msra.mxu0 0.0
    %189 = vmatprep.subr.mxu0 0.0
    %190 = vmatpush2.msra.mxu0 0.0
    %191 = vmatprep.subr.mxu0 0.0
    %192 = vmatpush2.msra.mxu0 0.0
    %193 = vmatprep.subr.mxu0 0.0
    %194 = vmatpush2.msra.mxu0 0.0
    %195 = vmatprep.subr.mxu0 0.0
    %196 = vmatpush2.msra.mxu0 0.0
    %197 = vmatprep.subr.mxu0 %v135
    %198 = vmatpush2.msra.mxu0 %v132
    %199 = vmatprep.subr.mxu0 %v108
    %200 = vmatpush2.msra.mxu0 %v107
    %201 = vmatprep.mubr.f32.mxu0 %v113
    %202 = vmatmul.mubr.f32.gmra.mxu0 %v63
    %v203 = vpop.f32.mrf.mxu0
    %v204 = vadd.f32 0.0, %v203
    %v205 = vpop.f32.mrf.mxu0
    %v206 = vadd.f32 0.0, %v205
    %207 = vmatprep.mubr.f32.mxu0 %v116
    %208 = vmatmul.mubr.f32.gmra.mxu0 %v65
    %v209 = vpop.f32.mrf.mxu0
    %v210 = vadd.f32 0.0, %v209
    %v211 = vpop.f32.mrf.mxu0
    %v212 = vadd.f32 0.0, %v211
    %213 = vmatprep.mubr.f32.mxu0 %v119
    %214 = vmatmul.mubr.f32.gmra.mxu0 %v67
    %v215 = vpop.f32.mrf.mxu0
    %v216 = vadd.f32 0.0, %v215
    %v217 = vpop.f32.mrf.mxu0
    %v218 = vadd.f32 0.0, %v217
    %219 = vmatprep.mubr.f32.mxu0 %v122
    %220 = vmatmul.mubr.f32.gmra.mxu0 %v69
    %v221 = vpop.f32.mrf.mxu0
    %v222 = vadd.f32 0.0, %v221
    %v223 = vpop.f32.mrf.mxu0
    %v224 = vadd.f32 0.0, %v223
    %225 = vmatprep.mubr.f32.mxu0 %v125
    %226 = vmatmul.mubr.f32.gmra.mxu0 %v71
    %v227 = vpop.f32.mrf.mxu0
    %v228 = vadd.f32 0.0, %v227
    %v229 = vpop.f32.mrf.mxu0
    %v230 = vadd.f32 0.0, %v229
    %231 = vmatprep.mubr.f32.mxu0 %v128
    %232 = vmatmul.mubr.f32.gmra.mxu0 %v73
    %v233 = vpop.f32.mrf.mxu0
    %v234 = vadd.f32 0.0, %v233
    %v235 = vpop.f32.mrf.mxu0
    %v236 = vadd.f32 0.0, %v235
    %237 = vdwg.mxu0
    %vm250 = vcmask 1046528
    %v251 = vrot.slane %v204, 1
    %v252 = vrot.slane %v210, 1
    %v253 = vsel %vm250, %v251, %v252
    %v254 = vrot.slane %v206, 1
    %v255 = vrot.slane %v212, 1
    %v256 = vsel %vm250, %v254, %v255
    %v257 = vrot.slane %v216, 1
    %v258 = vsel %vm250, %v252, %v257
    %v259 = vrot.slane %v218, 1
    %v260 = vsel %vm250, %v255, %v259
    %v261 = vrot.slane %v222, 1
    %v262 = vsel %vm250, %v257, %v261
    %v263 = vrot.slane %v224, 1
    %v264 = vsel %vm250, %v259, %v263
    %v265 = vrot.slane %v228, 1
    %v266 = vsel %vm250, %v261, %v265
    %v267 = vrot.slane %v230, 1
    %v268 = vsel %vm250, %v263, %v267
    %v269 = vrot.slane %v234, 1
    %v270 = vsel %vm250, %v265, %v269
    %v271 = vrot.slane %v236, 1
    %v272 = vsel %vm250, %v267, %v271
    %v285 = vmax.f32 %v204, %v253
    %v286 = vmax.f32 %v206, %v256
    %v287 = vmax.f32 %v210, %v258
    %v288 = vmax.f32 %v212, %v260
    %v289 = vmax.f32 %v216, %v262
    %v290 = vmax.f32 %v218, %v264
    %v291 = vmax.f32 %v222, %v266
    %v292 = vmax.f32 %v224, %v268
    %v293 = vmax.f32 %v228, %v270
    %v294 = vmax.f32 %v230, %v272
    %v295 = vmax.f32 %v234, %v269
    %v296 = vmax.f32 %v236, %v271
    %v297 = vld [vmem:[%s5] sm:$0xff]
    %v298 = vld [vmem:[%s5 + $0x8] sm:$0xff]
    %v299 = vld [vmem:[%s5 + $0x10] sm:$0xff]
    %v300 = vld [vmem:[%s5 + $0x18] sm:$0xff]
    %v301 = vld [vmem:[%s5 + $0x20] sm:$0xff]
    %v302 = vld [vmem:[%s5 + $0x28] sm:$0xff]
    %v303 = vld [vmem:[%s5 + $0x30] sm:$0xff]
    %v304 = vld [vmem:[%s5 + $0x38] sm:$0xff]
    %v305 = vld [vmem:[%s5 + $0x40] sm:$0xff]
    %v306 = vld [vmem:[%s5 + $0x48] sm:$0xff]
    %vm307 = vcmask 384000
    %v309 = vsel %vm307, %v297, 0
    %v312 = vsel %vm307, %v298, 0
    %v315 = vsel %vm307, %v299, 0
    %v318 = vsel %vm307, %v300, 0
    %v321 = vsel %vm307, %v301, 0
    %v324 = vsel %vm307, %v302, 0
    %v327 = vsel %vm307, %v303, 0
    %v330 = vsel %vm307, %v304, 0
    %v333 = vsel %vm307, %v305, 0
    %v336 = vsel %vm307, %v306, 0
    %v339 = vsel %vm250, %v295, 0
    %v342 = vsel %vm250, %v296, 0
    %344 = vmatprep.subr.mxu0 0.0
    %345 = vmatpush1.msra.mxu0 0.0
    %346 = vmatprep.subr.mxu0 0.0
    %347 = vmatpush1.msra.mxu0 0.0
    %348 = vmatprep.subr.mxu0 0.0
    %349 = vmatpush1.msra.mxu0 0.0
    %350 = vmatprep.subr.mxu0 0.0
    %351 = vmatpush1.msra.mxu0 0.0
    %352 = vmatprep.subr.mxu0 0.0
    %353 = vmatpush1.msra.mxu0 0.0
    %354 = vmatprep.subr.mxu0 0.0
    %355 = vmatpush1.msra.mxu0 0.0
    %356 = vmatprep.subr.mxu0 0.0
    %357 = vmatpush1.msra.mxu0 0.0
    %358 = vmatprep.subr.mxu0 0.0
    %359 = vmatpush1.msra.mxu0 0.0
    %360 = vmatprep.subr.mxu0 0.0
    %361 = vmatpush1.msra.mxu0 0.0
    %362 = vmatprep.subr.mxu0 0.0
    %363 = vmatpush1.msra.mxu0 0.0
    %364 = vmatprep.subr.mxu0 %v342
    %365 = vmatpush1.msra.mxu0 %v339
    %366 = vmatprep.subr.mxu0 %v294
    %367 = vmatpush1.msra.mxu0 %v293
    %368 = vmatprep.subr.mxu0 %v292
    %369 = vmatpush1.msra.mxu0 %v291
    %370 = vmatprep.subr.mxu0 %v290
    %371 = vmatpush1.msra.mxu0 %v289
    %372 = vmatprep.subr.mxu0 %v288
    %373 = vmatpush1.msra.mxu0 %v287
    %374 = vmatprep.subr.mxu0 %v286
    %375 = vmatpush1.msra.mxu0 %v285
    %376 = vmatprep.subr.mxu0 0.0
    %377 = vmatpush2.msra.mxu0 0.0
    %378 = vmatprep.subr.mxu0 0.0
    %379 = vmatpush2.msra.mxu0 0.0
    %380 = vmatprep.subr.mxu0 0.0
    %381 = vmatpush2.msra.mxu0 0.0
    %382 = vmatprep.subr.mxu0 0.0
    %383 = vmatpush2.msra.mxu0 0.0
    %384 = vmatprep.subr.mxu0 0.0
    %385 = vmatpush2.msra.mxu0 0.0
    %386 = vmatprep.subr.mxu0 0.0
    %387 = vmatpush2.msra.mxu0 0.0
    %388 = vmatprep.subr.mxu0 0.0
    %389 = vmatpush2.msra.mxu0 0.0
    %390 = vmatprep.subr.mxu0 0.0
    %391 = vmatpush2.msra.mxu0 0.0
    %392 = vmatprep.subr.mxu0 0.0
    %393 = vmatpush2.msra.mxu0 0.0
    %394 = vmatprep.subr.mxu0 0.0
    %395 = vmatpush2.msra.mxu0 0.0
    %396 = vmatprep.subr.mxu0 0.0
    %397 = vmatpush2.msra.mxu0 0.0
    %398 = vmatprep.subr.mxu0 0.0
    %399 = vmatpush2.msra.mxu0 0.0
    %400 = vmatprep.subr.mxu0 0.0
    %401 = vmatpush2.msra.mxu0 0.0
    %402 = vmatprep.subr.mxu0 0.0
    %403 = vmatpush2.msra.mxu0 0.0
    %404 = vmatprep.subr.mxu0 0.0
    %405 = vmatpush2.msra.mxu0 0.0
    %406 = vmatprep.subr.mxu0 0.0
    %407 = vmatpush2.msra.mxu0 0.0
    %408 = vmatprep.mubr.f32.mxu0 0.0
    %409 = vmatmul.mubr.f32.gmra.mxu0 %v309
    %v410 = vpop.f32.mrf.mxu0
    %v411 = vadd.f32 0.0, %v410
    %v412 = vpop.f32.mrf.mxu0
    %v413 = vadd.f32 0.0, %v412
    %414 = vmatprep.mubr.f32.mxu0 0.0
    %415 = vmatmul.mubr.f32.gmra.mxu0 %v312
    %v416 = vpop.f32.mrf.mxu0
    %v417 = vadd.f32 0.0, %v416
    %v418 = vpop.f32.mrf.mxu0
    %v419 = vadd.f32 0.0, %v418
    %420 = vmatprep.mubr.f32.mxu0 0.0
    %421 = vmatmul.mubr.f32.gmra.mxu0 %v315
    %v422 = vpop.f32.mrf.mxu0
    %v423 = vadd.f32 0.0, %v422
    %v424 = vpop.f32.mrf.mxu0
    %v425 = vadd.f32 0.0, %v424
    %426 = vmatprep.mubr.f32.mxu0 0.0
    %427 = vmatmul.mubr.f32.gmra.mxu0 %v318
    %v428 = vpop.f32.mrf.mxu0
    %v429 = vadd.f32 0.0, %v428
    %v430 = vpop.f32.mrf.mxu0
    %v431 = vadd.f32 0.0, %v430
    %432 = vmatprep.mubr.f32.mxu0 0.0
    %433 = vmatmul.mubr.f32.gmra.mxu0 %v321
    %v434 = vpop.f32.mrf.mxu0
    %v435 = vadd.f32 0.0, %v434
    %v436 = vpop.f32.mrf.mxu0
    %v437 = vadd.f32 0.0, %v436
    %438 = vmatprep.mubr.f32.mxu0 0.0
    %439 = vmatmul.mubr.f32.gmra.mxu0 %v324
    %v440 = vpop.f32.mrf.mxu0
    %v441 = vadd.f32 0.0, %v440
    %v442 = vpop.f32.mrf.mxu0
    %v443 = vadd.f32 0.0, %v442
    %444 = vmatprep.mubr.f32.mxu0 0.0
    %445 = vmatmul.mubr.f32.gmra.mxu0 %v327
    %v446 = vpop.f32.mrf.mxu0
    %v447 = vadd.f32 0.0, %v446
    %v448 = vpop.f32.mrf.mxu0
    %v449 = vadd.f32 0.0, %v448
    %450 = vmatprep.mubr.f32.mxu0 0.0
    %451 = vmatmul.mubr.f32.gmra.mxu0 %v330
    %v452 = vpop.f32.mrf.mxu0
    %v453 = vadd.f32 0.0, %v452
    %v454 = vpop.f32.mrf.mxu0
    %v455 = vadd.f32 0.0, %v454
    %456 = vmatprep.mubr.f32.mxu0 0.0
    %457 = vmatmul.mubr.f32.gmra.mxu0 %v333
    %v458 = vpop.f32.mrf.mxu0
    %v459 = vadd.f32 0.0, %v458
    %v460 = vpop.f32.mrf.mxu0
    %v461 = vadd.f32 0.0, %v460
    %462 = vmatprep.mubr.f32.mxu0 0.0
    %463 = vmatmul.mubr.f32.gmra.mxu0 %v336
    %v464 = vpop.f32.mrf.mxu0
    %v465 = vadd.f32 0.0, %v464
    %v466 = vpop.f32.mrf.mxu0
    %v467 = vadd.f32 0.0, %v466
    %468 = vdwg.mxu0
    %489 = vrot.lane.b32.xlu0 %v411, 118
    %v490 = vpop.permute.xlu0 %489
    %491 = vrot.lane.b32.xlu0 %v413, 118
    %v492 = vpop.permute.xlu0 %491
    %493 = vrot.lane.b32.xlu0 %v417, 118
    %v494 = vpop.permute.xlu0 %493
    %495 = vrot.lane.b32.xlu0 %v419, 118
    %v496 = vpop.permute.xlu0 %495
    %497 = vrot.lane.b32.xlu0 %v423, 118
    %v498 = vpop.permute.xlu0 %497
    %499 = vrot.lane.b32.xlu0 %v425, 118
    %v500 = vpop.permute.xlu0 %499
    %501 = vrot.lane.b32.xlu0 %v429, 118
    %v502 = vpop.permute.xlu0 %501
    %503 = vrot.lane.b32.xlu0 %v431, 118
    %v504 = vpop.permute.xlu0 %503
    %505 = vrot.lane.b32.xlu0 %v435, 118
    %v506 = vpop.permute.xlu0 %505
    %507 = vrot.lane.b32.xlu0 %v437, 118
    %v508 = vpop.permute.xlu0 %507
    %509 = vrot.lane.b32.xlu0 %v441, 118
    %v510 = vpop.permute.xlu0 %509
    %511 = vrot.lane.b32.xlu0 %v443, 118
    %v512 = vpop.permute.xlu0 %511
    %513 = vrot.lane.b32.xlu0 %v447, 118
    %v514 = vpop.permute.xlu0 %513
    %515 = vrot.lane.b32.xlu0 %v449, 118
    %v516 = vpop.permute.xlu0 %515
    %517 = vrot.lane.b32.xlu0 %v453, 118
    %v518 = vpop.permute.xlu0 %517
    %519 = vrot.lane.b32.xlu0 %v455, 118
    %v520 = vpop.permute.xlu0 %519
    %521 = vrot.lane.b32.xlu0 %v459, 118
    %v522 = vpop.permute.xlu0 %521
    %523 = vrot.lane.b32.xlu0 %v461, 118
    %v524 = vpop.permute.xlu0 %523
    %525 = vrot.lane.b32.xlu0 %v465, 118
    %v526 = vpop.permute.xlu0 %525
    %527 = vrot.lane.b32.xlu0 %v467, 118
    %v528 = vpop.permute.xlu0 %527
    %vm529 = vcmask 965632
    %v530 = vsel %vm529, %v490, %v492
    %v531 = vsel %vm529, %v494, %v496
    %v532 = vsel %vm529, %v498, %v500
    %v533 = vsel %vm529, %v502, %v504
    %v534 = vsel %vm529, %v506, %v508
    %v535 = vsel %vm529, %v510, %v512
    %v536 = vsel %vm529, %v514, %v516
    %v537 = vsel %vm529, %v518, %v520
    %v538 = vsel %vm529, %v522, %v524
    %v539 = vsel %vm529, %v526, %v528
    %v560 = vmax.f32 %v411, %v530
    %v561 = vmax.f32 %v413, %v492
    %v562 = vmax.f32 %v417, %v531
    %v563 = vmax.f32 %v419, %v496
    %v564 = vmax.f32 %v423, %v532
    %v565 = vmax.f32 %v425, %v500
    %v566 = vmax.f32 %v429, %v533
    %v567 = vmax.f32 %v431, %v504
    %v568 = vmax.f32 %v435, %v534
    %v569 = vmax.f32 %v437, %v508
    %v570 = vmax.f32 %v441, %v535
    %v571 = vmax.f32 %v443, %v512
    %v572 = vmax.f32 %v447, %v536
    %v573 = vmax.f32 %v449, %v516
    %v574 = vmax.f32 %v453, %v537
    %v575 = vmax.f32 %v455, %v520
    %v576 = vmax.f32 %v459, %v538
    %v577 = vmax.f32 %v461, %v524
    %v578 = vmax.f32 %v465, %v539
    %v579 = vmax.f32 %v467, %v528
    %v580 = vld [vmem:[%s6] sm:$0xff]
    %v581 = vld [vmem:[%s6 + $0x8] sm:$0xff]
    %v582 = vld [vmem:[%s6 + $0x10] sm:$0xff]
    %v583 = vld [vmem:[%s6 + $0x18] sm:$0xff]
    %v584 = vld [vmem:[%s6 + $0x20] sm:$0xff]
    %v585 = vld [vmem:[%s6 + $0x28] sm:$0xff]
    %v586 = vld [vmem:[%s6 + $0x30] sm:$0xff]
    %v587 = vld [vmem:[%s6 + $0x38] sm:$0xff]
    %v588 = vld [vmem:[%s6 + $0x40] sm:$0xff]
    %v589 = vld [vmem:[%s6 + $0x48] sm:$0xff]
    %v590 = vld [vmem:[%s6 + $0x50] sm:$0xff]
    %v591 = vld [vmem:[%s6 + $0x58] sm:$0xff]
    %v592 = vld [vmem:[%s6 + $0x60] sm:$0xff]
    %v593 = vld [vmem:[%s6 + $0x68] sm:$0xff]
    %v594 = vld [vmem:[%s6 + $0x70] sm:$0xff]
    %v595 = vld [vmem:[%s6 + $0x78] sm:$0xff]
    %v596 = vld [vmem:[%s6 + $0x80] sm:$0xff]
    %v597 = vld [vmem:[%s6 + $0x88] sm:$0xff]
    %v598 = vld [vmem:[%s6 + $0x90] sm:$0xff]
    %v599 = vld [vmem:[%s6 + $0x98] sm:$0xff]
    %v600 = vld [vmem:[%s6 + $0xa0] sm:$0xff]
    %v601 = vld [vmem:[%s6 + $0xa8] sm:$0xff]
    %v602 = vld [vmem:[%s6 + $0xb0] sm:$0xff]
    %v603 = vld [vmem:[%s6 + $0xb8] sm:$0xff]
    %v604 = vld [vmem:[%s6 + $0xc0] sm:$0xff]
    %v605 = vld [vmem:[%s6 + $0xc8] sm:$0xff]
    %v606 = vld [vmem:[%s6 + $0xd0] sm:$0xff]
    %v607 = vld [vmem:[%s6 + $0xd8] sm:$0xff]
    %v608 = vld [vmem:[%s6 + $0xe0] sm:$0x3f]
    %v609 = vld [vmem:[%s2] sm:$0x1]
    %v611 = vlaneseq
    %v612 = vshrl.u32 %v611, 7
    %v613 = vsub.s32 0, %v612
    %v614 = vrot.slane %v609, %v613
    %vm616 = vcmask 834560
    %v618 = vsel %vm616, %v561, 0
    %v621 = vsel %vm616, %v563, 0
    %v624 = vsel %vm616, %v565, 0
    %v627 = vsel %vm616, %v567, 0
    %v630 = vsel %vm616, %v569, 0
    %v633 = vsel %vm616, %v571, 0
    %v636 = vsel %vm616, %v573, 0
    %v639 = vsel %vm616, %v575, 0
    %v642 = vsel %vm616, %v577, 0
    %v645 = vsel %vm616, %v579, 0
    %vm647 = vcmask 1045504
    %v649 = vsel %vm647, %v608, 0
    %651 = vmatprep.subr.mxu0 0.0
    %652 = vmatpush1.msra.mxu0 %v595
    %653 = vmatprep.subr.mxu0 0.0
    %654 = vmatpush1.msra.mxu0 %v594
    %655 = vmatprep.subr.mxu0 0.0
    %656 = vmatpush1.msra.mxu0 %v593
    %657 = vmatprep.subr.mxu0 0.0
    %658 = vmatpush1.msra.mxu0 %v592
    %659 = vmatprep.subr.mxu0 0.0
    %660 = vmatpush1.msra.mxu0 %v591
    %661 = vmatprep.subr.mxu0 0.0
    %662 = vmatpush1.msra.mxu0 %v590
    %663 = vmatprep.subr.mxu0 0.0
    %664 = vmatpush1.msra.mxu0 %v589
    %665 = vmatprep.subr.mxu0 0.0
    %666 = vmatpush1.msra.mxu0 %v588
    %667 = vmatprep.subr.mxu0 0.0
    %668 = vmatpush1.msra.mxu0 %v587
    %669 = vmatprep.subr.mxu0 0.0
    %670 = vmatpush1.msra.mxu0 %v586
    %671 = vmatprep.subr.mxu0 0.0
    %672 = vmatpush1.msra.mxu0 %v585
    %673 = vmatprep.subr.mxu0 0.0
    %674 = vmatpush1.msra.mxu0 %v584
    %675 = vmatprep.subr.mxu0 0.0
    %676 = vmatpush1.msra.mxu0 %v583
    %677 = vmatprep.subr.mxu0 0.0
    %678 = vmatpush1.msra.mxu0 %v582
    %679 = vmatprep.subr.mxu0 0.0
    %680 = vmatpush1.msra.mxu0 %v581
    %681 = vmatprep.subr.mxu0 0.0
    %682 = vmatpush1.msra.mxu0 %v580
    %683 = vmatprep.subr.mxu0 0.0
    %684 = vmatpush2.msra.mxu0 0.0
    %685 = vmatprep.subr.mxu0 0.0
    %686 = vmatpush2.msra.mxu0 0.0
    %687 = vmatprep.subr.mxu0 0.0
    %688 = vmatpush2.msra.mxu0 0.0
    %689 = vmatprep.subr.mxu0 0.0
    %690 = vmatpush2.msra.mxu0 %v649
    %691 = vmatprep.subr.mxu0 0.0
    %692 = vmatpush2.msra.mxu0 %v607
    %693 = vmatprep.subr.mxu0 0.0
    %694 = vmatpush2.msra.mxu0 %v606
    %695 = vmatprep.subr.mxu0 0.0
    %696 = vmatpush2.msra.mxu0 %v605
    %697 = vmatprep.subr.mxu0 0.0
    %698 = vmatpush2.msra.mxu0 %v604
    %699 = vmatprep.subr.mxu0 0.0
    %700 = vmatpush2.msra.mxu0 %v603
    %701 = vmatprep.subr.mxu0 0.0
    %702 = vmatpush2.msra.mxu0 %v602
    %703 = vmatprep.subr.mxu0 0.0
    %704 = vmatpush2.msra.mxu0 %v601
    %705 = vmatprep.subr.mxu0 0.0
    %706 = vmatpush2.msra.mxu0 %v600
    %707 = vmatprep.subr.mxu0 0.0
    %708 = vmatpush2.msra.mxu0 %v599
    %709 = vmatprep.subr.mxu0 0.0
    %710 = vmatpush2.msra.mxu0 %v598
    %711 = vmatprep.subr.mxu0 0.0
    %712 = vmatpush2.msra.mxu0 %v597
    %713 = vmatprep.subr.mxu0 0.0
    %714 = vmatpush2.msra.mxu0 %v596
    %715 = vmatprep.mubr.f32.mxu0 %v618
    %716 = vmatmul.mubr.f32.gmra.mxu0 %v560
    %v717 = vpop.f32.mrf.mxu0
    %v718 = vadd.f32 %v614, %v717
    %v719 = vpop.f32.mrf.mxu0
    %720 = vmatprep.mubr.f32.mxu0 %v621
    %721 = vmatmul.mubr.f32.gmra.mxu0 %v562
    %v722 = vpop.f32.mrf.mxu0
    %v723 = vadd.f32 %v614, %v722
    %v724 = vpop.f32.mrf.mxu0
    %725 = vmatprep.mubr.f32.mxu0 %v624
    %726 = vmatmul.mubr.f32.gmra.mxu0 %v564
    %v727 = vpop.f32.mrf.mxu0
    %v728 = vadd.f32 %v614, %v727
    %v729 = vpop.f32.mrf.mxu0
    %730 = vmatprep.mubr.f32.mxu0 %v627
    %731 = vmatmul.mubr.f32.gmra.mxu0 %v566
    %v732 = vpop.f32.mrf.mxu0
    %v733 = vadd.f32 %v614, %v732
    %v734 = vpop.f32.mrf.mxu0
    %735 = vmatprep.mubr.f32.mxu0 %v630
    %736 = vmatmul.mubr.f32.gmra.mxu0 %v568
    %v737 = vpop.f32.mrf.mxu0
    %v738 = vadd.f32 %v614, %v737
    %v739 = vpop.f32.mrf.mxu0
    %740 = vmatprep.mubr.f32.mxu0 %v633
    %741 = vmatmul.mubr.f32.gmra.mxu0 %v570
    %v742 = vpop.f32.mrf.mxu0
    %v743 = vadd.f32 %v614, %v742
    %v744 = vpop.f32.mrf.mxu0
    %745 = vmatprep.mubr.f32.mxu0 %v636
    %746 = vmatmul.mubr.f32.gmra.mxu0 %v572
    %v747 = vpop.f32.mrf.mxu0
    %v748 = vadd.f32 %v614, %v747
    %v749 = vpop.f32.mrf.mxu0
    %750 = vmatprep.mubr.f32.mxu0 %v639
    %751 = vmatmul.mubr.f32.gmra.mxu0 %v574
    %v752 = vpop.f32.mrf.mxu0
    %v753 = vadd.f32 %v614, %v752
    %v754 = vpop.f32.mrf.mxu0
    %755 = vmatprep.mubr.f32.mxu0 %v642
    %756 = vmatmul.mubr.f32.gmra.mxu0 %v576
    %v757 = vpop.f32.mrf.mxu0
    %v758 = vadd.f32 %v614, %v757
    %v759 = vpop.f32.mrf.mxu0
    %760 = vmatprep.mubr.f32.mxu0 %v645
    %761 = vmatmul.mubr.f32.gmra.mxu0 %v578
    %v762 = vpop.f32.mrf.mxu0
    %v763 = vadd.f32 %v614, %v762
    %v764 = vpop.f32.mrf.mxu0
    %765 = vdwg.mxu0
    %v766 = vmax.f32 %v718, 0.0
    %v767 = vmax.f32 %v723, 0.0
    %v768 = vmax.f32 %v728, 0.0
    %v769 = vmax.f32 %v733, 0.0
    %v770 = vmax.f32 %v738, 0.0
    %v771 = vmax.f32 %v743, 0.0
    %v772 = vmax.f32 %v748, 0.0
    %v773 = vmax.f32 %v753, 0.0
    %v774 = vmax.f32 %v758, 0.0
    %v775 = vmax.f32 %v763, 0.0
    %v776 = vld [vmem:[%s3] sm:$0xff]
    %v777 = vld [vmem:[%s3 + $0x8] sm:$0xff]
    %v778 = vld [vmem:[%s3 + $0x10] sm:$0xff]
    %v779 = vld [vmem:[%s3 + $0x18] sm:$0xff]
    %v780 = vld [vmem:[%s3 + $0x20] sm:$0xff]
    %v781 = vld [vmem:[%s3 + $0x28] sm:$0xff]
    %v782 = vld [vmem:[%s3 + $0x30] sm:$0xff]
    %v783 = vld [vmem:[%s3 + $0x38] sm:$0xff]
    %v784 = vld [vmem:[%s3 + $0x40] sm:$0xff]
    %v785 = vld [vmem:[%s3 + $0x48] sm:$0xff]
    %v786 = vld [vmem:[%s3 + $0x50] sm:$0xff]
    %v787 = vld [vmem:[%s3 + $0x58] sm:$0xff]
    %v788 = vld [vmem:[%s3 + $0x60] sm:$0xff]
    %v789 = vld [vmem:[%s3 + $0x68] sm:$0xff]
    %v790 = vld [vmem:[%s3 + $0x70] sm:$0xff]
    %v791 = vld [vmem:[%s3 + $0x78] sm:$0xff]
    %v792 = vld [vmem:[%s3 + $0x80] sm:$0xff]
    %v793 = vld [vmem:[%s3 + $0x88] sm:$0xff]
    %v794 = vld [vmem:[%s3 + $0x90] sm:$0xff]
    %v795 = vld [vmem:[%s3 + $0x98] sm:$0xff]
    %v796 = vld [vmem:[%s3 + $0xa0] sm:$0xff]
    %v797 = vld [vmem:[%s3 + $0xa8] sm:$0xff]
    %v798 = vld [vmem:[%s3 + $0xb0] sm:$0xff]
    %v799 = vld [vmem:[%s3 + $0xb8] sm:$0xff]
    %v800 = vld [vmem:[%s3 + $0xc0] sm:$0xff]
    %v801 = vld [vmem:[%s3 + $0xc8] sm:$0xff]
    %v802 = vld [vmem:[%s3 + $0xd0] sm:$0xff]
    %v803 = vld [vmem:[%s3 + $0xd8] sm:$0xff]
    %v804 = vld [vmem:[%s3 + $0xe0] sm:$0xff]
    %v805 = vld [vmem:[%s3 + $0xe8] sm:$0xff]
    %s806 = scalar_lea.vmem %s3, 240
    %v807 = vld [vmem:[%s806] sm:$0xff]
    %v808 = vld [vmem:[%s806 + $0x8] sm:$0xff]
    %v809 = vld [vmem:[%s806 + $0x10] sm:$0xff]
    %v810 = vld [vmem:[%s806 + $0x18] sm:$0xff]
    %v811 = vld [vmem:[%s806 + $0x20] sm:$0xff]
    %v812 = vld [vmem:[%s806 + $0x28] sm:$0xff]
    %v813 = vld [vmem:[%s806 + $0x30] sm:$0xff]
    %v814 = vld [vmem:[%s806 + $0x38] sm:$0xff]
    %v815 = vld [vmem:[%s806 + $0x40] sm:$0xff]
    %v816 = vld [vmem:[%s806 + $0x48] sm:$0xff]
    %v817 = vld [vmem:[%s806 + $0x50] sm:$0xff]
    %v818 = vld [vmem:[%s806 + $0x58] sm:$0xff]
    %v819 = vld [vmem:[%s806 + $0x60] sm:$0xff]
    %v820 = vld [vmem:[%s806 + $0x68] sm:$0xff]
    %v821 = vld [vmem:[%s806 + $0x70] sm:$0xff]
    %v822 = vld [vmem:[%s806 + $0x78] sm:$0xff]
    %v823 = vld [vmem:[%s806 + $0x80] sm:$0xff]
    %v824 = vld [vmem:[%s806 + $0x88] sm:$0xff]
    %v825 = vld [vmem:[%s806 + $0x90] sm:$0xff]
    %v826 = vld [vmem:[%s806 + $0x98] sm:$0xff]
    %v827 = vld [vmem:[%s806 + $0xa0] sm:$0xff]
    %v828 = vld [vmem:[%s806 + $0xa8] sm:$0xff]
    %v829 = vld [vmem:[%s806 + $0xb0] sm:$0xff]
    %v830 = vld [vmem:[%s806 + $0xb8] sm:$0xff]
    %v831 = vld [vmem:[%s806 + $0xc0] sm:$0xff]
    %v832 = vld [vmem:[%s806 + $0xc8] sm:$0xff]
    %v833 = vld [vmem:[%s806 + $0xd0] sm:$0xff]
    %v834 = vld [vmem:[%s806 + $0xd8] sm:$0xff]
    %v835 = vld [vmem:[%s806 + $0xe0] sm:$0xff]
    %v836 = vld [vmem:[%s806 + $0xe8] sm:$0xff]
    %vm837 = vcmask 982016
    %v839 = vsel %vm837, %v768, 0
    %v842 = vsel %vm837, %v769, 0
    %844 = vmatprep.subr.mxu0 0.0
    %845 = vmatpush1.msra.mxu0 0.0
    %846 = vmatprep.subr.mxu0 %v836
    %847 = vmatpush1.msra.mxu0 %v835
    %848 = vmatprep.subr.mxu0 %v834
    %849 = vmatpush1.msra.mxu0 %v833
    %850 = vmatprep.subr.mxu0 %v832
    %851 = vmatpush1.msra.mxu0 %v831
    %852 = vmatprep.subr.mxu0 %v830
    %853 = vmatpush1.msra.mxu0 %v829
    %854 = vmatprep.subr.mxu0 %v828
    %855 = vmatpush1.msra.mxu0 %v827
    %856 = vmatprep.subr.mxu0 %v826
    %857 = vmatpush1.msra.mxu0 %v825
    %858 = vmatprep.subr.mxu0 %v824
    %859 = vmatpush1.msra.mxu0 %v823
    %860 = vmatprep.subr.mxu0 %v822
    %861 = vmatpush1.msra.mxu0 %v821
    %862 = vmatprep.subr.mxu0 %v820
    %863 = vmatpush1.msra.mxu0 %v819
    %864 = vmatprep.subr.mxu0 %v818
    %865 = vmatpush1.msra.mxu0 %v817
    %866 = vmatprep.subr.mxu0 %v816
    %867 = vmatpush1.msra.mxu0 %v815
    %868 = vmatprep.subr.mxu0 %v814
    %869 = vmatpush1.msra.mxu0 %v813
    %870 = vmatprep.subr.mxu0 %v812
    %871 = vmatpush1.msra.mxu0 %v811
    %872 = vmatprep.subr.mxu0 %v810
    %873 = vmatpush1.msra.mxu0 %v809
    %874 = vmatprep.subr.mxu0 %v808
    %875 = vmatpush1.msra.mxu0 %v807
    %876 = vmatprep.subr.mxu0 0.0
    %877 = vmatpush2.msra.mxu0 0.0
    %878 = vmatprep.subr.mxu0 0.0
    %879 = vmatpush2.msra.mxu0 0.0
    %880 = vmatprep.subr.mxu0 0.0
    %881 = vmatpush2.msra.mxu0 0.0
    %882 = vmatprep.subr.mxu0 0.0
    %883 = vmatpush2.msra.mxu0 0.0
    %884 = vmatprep.subr.mxu0 0.0
    %885 = vmatpush2.msra.mxu0 0.0
    %886 = vmatprep.subr.mxu0 0.0
    %887 = vmatpush2.msra.mxu0 0.0
    %888 = vmatprep.subr.mxu0 0.0
    %889 = vmatpush2.msra.mxu0 0.0
    %890 = vmatprep.subr.mxu0 0.0
    %891 = vmatpush2.msra.mxu0 0.0
    %892 = vmatprep.subr.mxu0 0.0
    %893 = vmatpush2.msra.mxu0 0.0
    %894 = vmatprep.subr.mxu0 0.0
    %895 = vmatpush2.msra.mxu0 0.0
    %896 = vmatprep.subr.mxu0 0.0
    %897 = vmatpush2.msra.mxu0 0.0
    %898 = vmatprep.subr.mxu0 0.0
    %899 = vmatpush2.msra.mxu0 0.0
    %900 = vmatprep.subr.mxu0 0.0
    %901 = vmatpush2.msra.mxu0 0.0
    %902 = vmatprep.subr.mxu0 0.0
    %903 = vmatpush2.msra.mxu0 0.0
    %904 = vmatprep.subr.mxu0 0.0
    %905 = vmatpush2.msra.mxu0 0.0
    %906 = vmatprep.subr.mxu0 0.0
    %907 = vmatpush2.msra.mxu0 0.0
    %908 = vmatprep.mubr.f32.mxu0 0.0
    %909 = vmatmul.mubr.f32.gmra.mxu0 %v839
    %v910 = vpop.f32.mrf.mxu0
    %v911 = vadd.f32 0.0, %v910
    %v912 = vpop.f32.mrf.mxu0
    %v913 = vadd.f32 0.0, %v912
    %914 = vmatprep.mubr.f32.mxu0 0.0
    %915 = vmatmul.mubr.f32.gmra.mxu0 %v842
    %v916 = vpop.f32.mrf.mxu0
    %v917 = vadd.f32 0.0, %v916
    %v918 = vpop.f32.mrf.mxu0
    %v919 = vadd.f32 0.0, %v918
    %920 = vdwg.mxu0
    %v922 = vsel %vm837, %v766, 0
    %v925 = vsel %vm837, %v767, 0
    %927 = vmatprep.subr.mxu0 0.0
    %928 = vmatpush1.msra.mxu0 0.0
    %929 = vmatprep.subr.mxu0 %v805
    %930 = vmatpush1.msra.mxu0 %v804
    %931 = vmatprep.subr.mxu0 %v803
    %932 = vmatpush1.msra.mxu0 %v802
    %933 = vmatprep.subr.mxu0 %v801
    %934 = vmatpush1.msra.mxu0 %v800
    %935 = vmatprep.subr.mxu0 %v799
    %936 = vmatpush1.msra.mxu0 %v798
    %937 = vmatprep.subr.mxu0 %v797
    %938 = vmatpush1.msra.mxu0 %v796
    %939 = vmatprep.subr.mxu0 %v795
    %940 = vmatpush1.msra.mxu0 %v794
    %941 = vmatprep.subr.mxu0 %v793
    %942 = vmatpush1.msra.mxu0 %v792
    %943 = vmatprep.subr.mxu0 %v791
    %944 = vmatpush1.msra.mxu0 %v790
    %945 = vmatprep.subr.mxu0 %v789
    %946 = vmatpush1.msra.mxu0 %v788
    %947 = vmatprep.subr.mxu0 %v787
    %948 = vmatpush1.msra.mxu0 %v786
    %949 = vmatprep.subr.mxu0 %v785
    %950 = vmatpush1.msra.mxu0 %v784
    %951 = vmatprep.subr.mxu0 %v783
    %952 = vmatpush1.msra.mxu0 %v782
    %953 = vmatprep.subr.mxu0 %v781
    %954 = vmatpush1.msra.mxu0 %v780
    %955 = vmatprep.subr.mxu0 %v779
    %956 = vmatpush1.msra.mxu0 %v778
    %957 = vmatprep.subr.mxu0 %v777
    %958 = vmatpush1.msra.mxu0 %v776
    %959 = vmatprep.subr.mxu0 0.0
    %960 = vmatpush2.msra.mxu0 0.0
    %961 = vmatprep.subr.mxu0 0.0
    %962 = vmatpush2.msra.mxu0 0.0
    %963 = vmatprep.subr.mxu0 0.0
    %964 = vmatpush2.msra.mxu0 0.0
    %965 = vmatprep.subr.mxu0 0.0
    %966 = vmatpush2.msra.mxu0 0.0
    %967 = vmatprep.subr.mxu0 0.0
    %968 = vmatpush2.msra.mxu0 0.0
    %969 = vmatprep.subr.mxu0 0.0
    %970 = vmatpush2.msra.mxu0 0.0
    %971 = vmatprep.subr.mxu0 0.0
    %972 = vmatpush2.msra.mxu0 0.0
    %973 = vmatprep.subr.mxu0 0.0
    %974 = vmatpush2.msra.mxu0 0.0
    %975 = vmatprep.subr.mxu0 0.0
    %976 = vmatpush2.msra.mxu0 0.0
    %977 = vmatprep.subr.mxu0 0.0
    %978 = vmatpush2.msra.mxu0 0.0
    %979 = vmatprep.subr.mxu0 0.0
    %980 = vmatpush2.msra.mxu0 0.0
    %981 = vmatprep.subr.mxu0 0.0
    %982 = vmatpush2.msra.mxu0 0.0
    %983 = vmatprep.subr.mxu0 0.0
    %984 = vmatpush2.msra.mxu0 0.0
    %985 = vmatprep.subr.mxu0 0.0
    %986 = vmatpush2.msra.mxu0 0.0
    %987 = vmatprep.subr.mxu0 0.0
    %988 = vmatpush2.msra.mxu0 0.0
    %989 = vmatprep.subr.mxu0 0.0
    %990 = vmatpush2.msra.mxu0 0.0
    %991 = vmatprep.mubr.f32.mxu0 0.0
    %992 = vmatmul.mubr.f32.gmra.mxu0 %v922
    %v993 = vpop.f32.mrf.mxu0
    %v994 = vadd.f32 %v911, %v993
    %v995 = vpop.f32.mrf.mxu0
    %v996 = vadd.f32 %v913, %v995
    %997 = vmatprep.mubr.f32.mxu0 0.0
    %998 = vmatmul.mubr.f32.gmra.mxu0 %v925
    %v999 = vpop.f32.mrf.mxu0
    %v1000 = vadd.f32 %v917, %v999
    %v1001 = vpop.f32.mrf.mxu0
    %v1002 = vadd.f32 %v919, %v1001
    %1003 = vdwg.mxu0
    %s1004 = scalar_lea.vmem %s3, 480
    %v1005 = vld [vmem:[%s1004] sm:$0xff]
    %v1006 = vld [vmem:[%s1004 + $0x8] sm:$0xff]
    %v1007 = vld [vmem:[%s1004 + $0x10] sm:$0xff]
    %v1008 = vld [vmem:[%s1004 + $0x18] sm:$0xff]
    %v1009 = vld [vmem:[%s1004 + $0x20] sm:$0xff]
    %v1010 = vld [vmem:[%s1004 + $0x28] sm:$0xff]
    %v1011 = vld [vmem:[%s1004 + $0x30] sm:$0xff]
    %v1012 = vld [vmem:[%s1004 + $0x38] sm:$0xff]
    %v1013 = vld [vmem:[%s1004 + $0x40] sm:$0xff]
    %v1014 = vld [vmem:[%s1004 + $0x48] sm:$0xff]
    %v1015 = vld [vmem:[%s1004 + $0x50] sm:$0xff]
    %v1016 = vld [vmem:[%s1004 + $0x58] sm:$0xff]
    %v1017 = vld [vmem:[%s1004 + $0x60] sm:$0xff]
    %v1018 = vld [vmem:[%s1004 + $0x68] sm:$0xff]
    %v1019 = vld [vmem:[%s1004 + $0x70] sm:$0xff]
    %v1020 = vld [vmem:[%s1004 + $0x78] sm:$0xff]
    %v1021 = vld [vmem:[%s1004 + $0x80] sm:$0xff]
    %v1022 = vld [vmem:[%s1004 + $0x88] sm:$0xff]
    %v1023 = vld [vmem:[%s1004 + $0x90] sm:$0xff]
    %v1024 = vld [vmem:[%s1004 + $0x98] sm:$0xff]
    %v1025 = vld [vmem:[%s1004 + $0xa0] sm:$0xff]
    %v1026 = vld [vmem:[%s1004 + $0xa8] sm:$0xff]
    %v1027 = vld [vmem:[%s1004 + $0xb0] sm:$0xff]
    %v1028 = vld [vmem:[%s1004 + $0xb8] sm:$0xff]
    %v1029 = vld [vmem:[%s1004 + $0xc0] sm:$0xff]
    %v1030 = vld [vmem:[%s1004 + $0xc8] sm:$0xff]
    %v1031 = vld [vmem:[%s1004 + $0xd0] sm:$0xff]
    %v1032 = vld [vmem:[%s1004 + $0xd8] sm:$0xff]
    %v1033 = vld [vmem:[%s1004 + $0xe0] sm:$0xff]
    %v1034 = vld [vmem:[%s1004 + $0xe8] sm:$0xff]
    %v1036 = vsel %vm837, %v770, 0
    %v1039 = vsel %vm837, %v771, 0
    %1041 = vmatprep.subr.mxu0 0.0
    %1042 = vmatpush1.msra.mxu0 0.0
    %1043 = vmatprep.subr.mxu0 %v1034
    %1044 = vmatpush1.msra.mxu0 %v1033
    %1045 = vmatprep.subr.mxu0 %v1032
    %1046 = vmatpush1.msra.mxu0 %v1031
    %1047 = vmatprep.subr.mxu0 %v1030
    %1048 = vmatpush1.msra.mxu0 %v1029
    %1049 = vmatprep.subr.mxu0 %v1028
    %1050 = vmatpush1.msra.mxu0 %v1027
    %1051 = vmatprep.subr.mxu0 %v1026
    %1052 = vmatpush1.msra.mxu0 %v1025
    %1053 = vmatprep.subr.mxu0 %v1024
    %1054 = vmatpush1.msra.mxu0 %v1023
    %1055 = vmatprep.subr.mxu0 %v1022
    %1056 = vmatpush1.msra.mxu0 %v1021
    %1057 = vmatprep.subr.mxu0 %v1020
    %1058 = vmatpush1.msra.mxu0 %v1019
    %1059 = vmatprep.subr.mxu0 %v1018
    %1060 = vmatpush1.msra.mxu0 %v1017
    %1061 = vmatprep.subr.mxu0 %v1016
    %1062 = vmatpush1.msra.mxu0 %v1015
    %1063 = vmatprep.subr.mxu0 %v1014
    %1064 = vmatpush1.msra.mxu0 %v1013
    %1065 = vmatprep.subr.mxu0 %v1012
    %1066 = vmatpush1.msra.mxu0 %v1011
    %1067 = vmatprep.subr.mxu0 %v1010
    %1068 = vmatpush1.msra.mxu0 %v1009
    %1069 = vmatprep.subr.mxu0 %v1008
    %1070 = vmatpush1.msra.mxu0 %v1007
    %1071 = vmatprep.subr.mxu0 %v1006
    %1072 = vmatpush1.msra.mxu0 %v1005
    %1073 = vmatprep.subr.mxu0 0.0
    %1074 = vmatpush2.msra.mxu0 0.0
    %1075 = vmatprep.subr.mxu0 0.0
    %1076 = vmatpush2.msra.mxu0 0.0
    %1077 = vmatprep.subr.mxu0 0.0
    %1078 = vmatpush2.msra.mxu0 0.0
    %1079 = vmatprep.subr.mxu0 0.0
    %1080 = vmatpush2.msra.mxu0 0.0
    %1081 = vmatprep.subr.mxu0 0.0
    %1082 = vmatpush2.msra.mxu0 0.0
    %1083 = vmatprep.subr.mxu0 0.0
    %1084 = vmatpush2.msra.mxu0 0.0
    %1085 = vmatprep.subr.mxu0 0.0
    %1086 = vmatpush2.msra.mxu0 0.0
    %1087 = vmatprep.subr.mxu0 0.0
    %1088 = vmatpush2.msra.mxu0 0.0
    %1089 = vmatprep.subr.mxu0 0.0
    %1090 = vmatpush2.msra.mxu0 0.0
    %1091 = vmatprep.subr.mxu0 0.0
    %1092 = vmatpush2.msra.mxu0 0.0
    %1093 = vmatprep.subr.mxu0 0.0
    %1094 = vmatpush2.msra.mxu0 0.0
    %1095 = vmatprep.subr.mxu0 0.0
    %1096 = vmatpush2.msra.mxu0 0.0
    %1097 = vmatprep.subr.mxu0 0.0
    %1098 = vmatpush2.msra.mxu0 0.0
    %1099 = vmatprep.subr.mxu0 0.0
    %1100 = vmatpush2.msra.mxu0 0.0
    %1101 = vmatprep.subr.mxu0 0.0
    %1102 = vmatpush2.msra.mxu0 0.0
    %1103 = vmatprep.subr.mxu0 0.0
    %1104 = vmatpush2.msra.mxu0 0.0
    %1105 = vmatprep.mubr.f32.mxu0 0.0
    %1106 = vmatmul.mubr.f32.gmra.mxu0 %v1036
    %v1107 = vpop.f32.mrf.mxu0
    %v1108 = vadd.f32 0.0, %v1107
    %v1109 = vpop.f32.mrf.mxu0
    %v1110 = vadd.f32 0.0, %v1109
    %1111 = vmatprep.mubr.f32.mxu0 0.0
    %1112 = vmatmul.mubr.f32.gmra.mxu0 %v1039
    %v1113 = vpop.f32.mrf.mxu0
    %v1114 = vadd.f32 0.0, %v1113
    %v1115 = vpop.f32.mrf.mxu0
    %v1116 = vadd.f32 0.0, %v1115
    %1117 = vdwg.mxu0
    %v1118 = vadd.f32 %v994, %v1108
    %v1119 = vadd.f32 %v996, %v1110
    %v1120 = vadd.f32 %v1000, %v1114
    %v1121 = vadd.f32 %v1002, %v1116
    %s1122 = scalar_lea.vmem %s3, 720
    %v1123 = vld [vmem:[%s1122] sm:$0xff]
    %v1124 = vld [vmem:[%s1122 + $0x8] sm:$0xff]
    %v1125 = vld [vmem:[%s1122 + $0x10] sm:$0xff]
    %v1126 = vld [vmem:[%s1122 + $0x18] sm:$0xff]
    %v1127 = vld [vmem:[%s1122 + $0x20] sm:$0xff]
    %v1128 = vld [vmem:[%s1122 + $0x28] sm:$0xff]
    %v1129 = vld [vmem:[%s1122 + $0x30] sm:$0xff]
    %v1130 = vld [vmem:[%s1122 + $0x38] sm:$0xff]
    %v1131 = vld [vmem:[%s1122 + $0x40] sm:$0xff]
    %v1132 = vld [vmem:[%s1122 + $0x48] sm:$0xff]
    %v1133 = vld [vmem:[%s1122 + $0x50] sm:$0xff]
    %v1134 = vld [vmem:[%s1122 + $0x58] sm:$0xff]
    %v1135 = vld [vmem:[%s1122 + $0x60] sm:$0xff]
    %v1136 = vld [vmem:[%s1122 + $0x68] sm:$0xff]
    %v1137 = vld [vmem:[%s1122 + $0x70] sm:$0xff]
    %v1138 = vld [vmem:[%s1122 + $0x78] sm:$0xff]
    %v1139 = vld [vmem:[%s1122 + $0x80] sm:$0xff]
    %v1140 = vld [vmem:[%s1122 + $0x88] sm:$0xff]
    %v1141 = vld [vmem:[%s1122 + $0x90] sm:$0xff]
    %v1142 = vld [vmem:[%s1122 + $0x98] sm:$0xff]
    %v1143 = vld [vmem:[%s1122 + $0xa0] sm:$0xff]
    %v1144 = vld [vmem:[%s1122 + $0xa8] sm:$0xff]
    %v1145 = vld [vmem:[%s1122 + $0xb0] sm:$0xff]
    %v1146 = vld [vmem:[%s1122 + $0xb8] sm:$0xff]
    %v1147 = vld [vmem:[%s1122 + $0xc0] sm:$0xff]
    %v1148 = vld [vmem:[%s1122 + $0xc8] sm:$0xff]
    %v1149 = vld [vmem:[%s1122 + $0xd0] sm:$0xff]
    %v1150 = vld [vmem:[%s1122 + $0xd8] sm:$0xff]
    %v1151 = vld [vmem:[%s1122 + $0xe0] sm:$0xff]
    %v1152 = vld [vmem:[%s1122 + $0xe8] sm:$0xff]
    %v1154 = vsel %vm837, %v772, 0
    %v1157 = vsel %vm837, %v773, 0
    %1159 = vmatprep.subr.mxu0 0.0
    %1160 = vmatpush1.msra.mxu0 0.0
    %1161 = vmatprep.subr.mxu0 %v1152
    %1162 = vmatpush1.msra.mxu0 %v1151
    %1163 = vmatprep.subr.mxu0 %v1150
    %1164 = vmatpush1.msra.mxu0 %v1149
    %1165 = vmatprep.subr.mxu0 %v1148
    %1166 = vmatpush1.msra.mxu0 %v1147
    %1167 = vmatprep.subr.mxu0 %v1146
    %1168 = vmatpush1.msra.mxu0 %v1145
    %1169 = vmatprep.subr.mxu0 %v1144
    %1170 = vmatpush1.msra.mxu0 %v1143
    %1171 = vmatprep.subr.mxu0 %v1142
    %1172 = vmatpush1.msra.mxu0 %v1141
    %1173 = vmatprep.subr.mxu0 %v1140
    %1174 = vmatpush1.msra.mxu0 %v1139
    %1175 = vmatprep.subr.mxu0 %v1138
    %1176 = vmatpush1.msra.mxu0 %v1137
    %1177 = vmatprep.subr.mxu0 %v1136
    %1178 = vmatpush1.msra.mxu0 %v1135
    %1179 = vmatprep.subr.mxu0 %v1134
    %1180 = vmatpush1.msra.mxu0 %v1133
    %1181 = vmatprep.subr.mxu0 %v1132
    %1182 = vmatpush1.msra.mxu0 %v1131
    %1183 = vmatprep.subr.mxu0 %v1130
    %1184 = vmatpush1.msra.mxu0 %v1129
    %1185 = vmatprep.subr.mxu0 %v1128
    %1186 = vmatpush1.msra.mxu0 %v1127
    %1187 = vmatprep.subr.mxu0 %v1126
    %1188 = vmatpush1.msra.mxu0 %v1125
    %1189 = vmatprep.subr.mxu0 %v1124
    %1190 = vmatpush1.msra.mxu0 %v1123
    %1191 = vmatprep.subr.mxu0 0.0
    %1192 = vmatpush2.msra.mxu0 0.0
    %1193 = vmatprep.subr.mxu0 0.0
    %1194 = vmatpush2.msra.mxu0 0.0
    %1195 = vmatprep.subr.mxu0 0.0
    %1196 = vmatpush2.msra.mxu0 0.0
    %1197 = vmatprep.subr.mxu0 0.0
    %1198 = vmatpush2.msra.mxu0 0.0
    %1199 = vmatprep.subr.mxu0 0.0
    %1200 = vmatpush2.msra.mxu0 0.0
    %1201 = vmatprep.subr.mxu0 0.0
    %1202 = vmatpush2.msra.mxu0 0.0
    %1203 = vmatprep.subr.mxu0 0.0
    %1204 = vmatpush2.msra.mxu0 0.0
    %1205 = vmatprep.subr.mxu0 0.0
    %1206 = vmatpush2.msra.mxu0 0.0
    %1207 = vmatprep.subr.mxu0 0.0
    %1208 = vmatpush2.msra.mxu0 0.0
    %1209 = vmatprep.subr.mxu0 0.0
    %1210 = vmatpush2.msra.mxu0 0.0
    %1211 = vmatprep.subr.mxu0 0.0
    %1212 = vmatpush2.msra.mxu0 0.0
    %1213 = vmatprep.subr.mxu0 0.0
    %1214 = vmatpush2.msra.mxu0 0.0
    %1215 = vmatprep.subr.mxu0 0.0
    %1216 = vmatpush2.msra.mxu0 0.0
    %1217 = vmatprep.subr.mxu0 0.0
    %1218 = vmatpush2.msra.mxu0 0.0
    %1219 = vmatprep.subr.mxu0 0.0
    %1220 = vmatpush2.msra.mxu0 0.0
    %1221 = vmatprep.subr.mxu0 0.0
    %1222 = vmatpush2.msra.mxu0 0.0
    %1223 = vmatprep.mubr.f32.mxu0 0.0
    %1224 = vmatmul.mubr.f32.gmra.mxu0 %v1154
    %v1225 = vpop.f32.mrf.mxu0
    %v1226 = vadd.f32 0.0, %v1225
    %v1227 = vpop.f32.mrf.mxu0
    %v1228 = vadd.f32 0.0, %v1227
    %1229 = vmatprep.mubr.f32.mxu0 0.0
    %1230 = vmatmul.mubr.f32.gmra.mxu0 %v1157
    %v1231 = vpop.f32.mrf.mxu0
    %v1232 = vadd.f32 0.0, %v1231
    %v1233 = vpop.f32.mrf.mxu0
    %v1234 = vadd.f32 0.0, %v1233
    %1235 = vdwg.mxu0
    %v1236 = vadd.f32 %v1118, %v1226
    %v1237 = vadd.f32 %v1119, %v1228
    %v1238 = vadd.f32 %v1120, %v1232
    %v1239 = vadd.f32 %v1121, %v1234
    %s1240 = scalar_lea.vmem %s3, 960
    %v1241 = vld [vmem:[%s1240] sm:$0xff]
    %v1242 = vld [vmem:[%s1240 + $0x8] sm:$0xff]
    %v1243 = vld [vmem:[%s1240 + $0x10] sm:$0xff]
    %v1244 = vld [vmem:[%s1240 + $0x18] sm:$0xff]
    %v1245 = vld [vmem:[%s1240 + $0x20] sm:$0xff]
    %v1246 = vld [vmem:[%s1240 + $0x28] sm:$0xff]
    %v1247 = vld [vmem:[%s1240 + $0x30] sm:$0xff]
    %v1248 = vld [vmem:[%s1240 + $0x38] sm:$0xff]
    %v1249 = vld [vmem:[%s1240 + $0x40] sm:$0xff]
    %v1250 = vld [vmem:[%s1240 + $0x48] sm:$0xff]
    %v1251 = vld [vmem:[%s1240 + $0x50] sm:$0xff]
    %v1252 = vld [vmem:[%s1240 + $0x58] sm:$0xff]
    %v1253 = vld [vmem:[%s1240 + $0x60] sm:$0xff]
    %v1254 = vld [vmem:[%s1240 + $0x68] sm:$0xff]
    %v1255 = vld [vmem:[%s1240 + $0x70] sm:$0xff]
    %v1256 = vld [vmem:[%s1240 + $0x78] sm:$0xff]
    %v1257 = vld [vmem:[%s1240 + $0x80] sm:$0xff]
    %v1258 = vld [vmem:[%s1240 + $0x88] sm:$0xff]
    %v1259 = vld [vmem:[%s1240 + $0x90] sm:$0xff]
    %v1260 = vld [vmem:[%s1240 + $0x98] sm:$0xff]
    %v1261 = vld [vmem:[%s1240 + $0xa0] sm:$0xff]
    %v1262 = vld [vmem:[%s1240 + $0xa8] sm:$0xff]
    %v1263 = vld [vmem:[%s1240 + $0xb0] sm:$0xff]
    %v1264 = vld [vmem:[%s1240 + $0xb8] sm:$0xff]
    %v1265 = vld [vmem:[%s1240 + $0xc0] sm:$0xff]
    %v1266 = vld [vmem:[%s1240 + $0xc8] sm:$0xff]
    %v1267 = vld [vmem:[%s1240 + $0xd0] sm:$0xff]
    %v1268 = vld [vmem:[%s1240 + $0xd8] sm:$0xff]
    %v1269 = vld [vmem:[%s1240 + $0xe0] sm:$0xff]
    %v1270 = vld [vmem:[%s1240 + $0xe8] sm:$0xff]
    %v1272 = vsel %vm837, %v774, 0
    %v1275 = vsel %vm837, %v775, 0
    %1277 = vmatprep.subr.mxu0 0.0
    %1278 = vmatpush1.msra.mxu0 0.0
    %1279 = vmatprep.subr.mxu0 %v1270
    %1280 = vmatpush1.msra.mxu0 %v1269
    %1281 = vmatprep.subr.mxu0 %v1268
    %1282 = vmatpush1.msra.mxu0 %v1267
    %1283 = vmatprep.subr.mxu0 %v1266
    %1284 = vmatpush1.msra.mxu0 %v1265
    %1285 = vmatprep.subr.mxu0 %v1264
    %1286 = vmatpush1.msra.mxu0 %v1263
    %1287 = vmatprep.subr.mxu0 %v1262
    %1288 = vmatpush1.msra.mxu0 %v1261
    %1289 = vmatprep.subr.mxu0 %v1260
    %1290 = vmatpush1.msra.mxu0 %v1259
    %1291 = vmatprep.subr.mxu0 %v1258
    %1292 = vmatpush1.msra.mxu0 %v1257
    %1293 = vmatprep.subr.mxu0 %v1256
    %1294 = vmatpush1.msra.mxu0 %v1255
    %1295 = vmatprep.subr.mxu0 %v1254
    %1296 = vmatpush1.msra.mxu0 %v1253
    %1297 = vmatprep.subr.mxu0 %v1252
    %1298 = vmatpush1.msra.mxu0 %v1251
    %1299 = vmatprep.subr.mxu0 %v1250
    %1300 = vmatpush1.msra.mxu0 %v1249
    %1301 = vmatprep.subr.mxu0 %v1248
    %1302 = vmatpush1.msra.mxu0 %v1247
    %1303 = vmatprep.subr.mxu0 %v1246
    %1304 = vmatpush1.msra.mxu0 %v1245
    %1305 = vmatprep.subr.mxu0 %v1244
    %1306 = vmatpush1.msra.mxu0 %v1243
    %1307 = vmatprep.subr.mxu0 %v1242
    %1308 = vmatpush1.msra.mxu0 %v1241
    %1309 = vmatprep.subr.mxu0 0.0
    %1310 = vmatpush2.msra.mxu0 0.0
    %1311 = vmatprep.subr.mxu0 0.0
    %1312 = vmatpush2.msra.mxu0 0.0
    %1313 = vmatprep.subr.mxu0 0.0
    %1314 = vmatpush2.msra.mxu0 0.0
    %1315 = vmatprep.subr.mxu0 0.0
    %1316 = vmatpush2.msra.mxu0 0.0
    %1317 = vmatprep.subr.mxu0 0.0
    %1318 = vmatpush2.msra.mxu0 0.0
    %1319 = vmatprep.subr.mxu0 0.0
    %1320 = vmatpush2.msra.mxu0 0.0
    %1321 = vmatprep.subr.mxu0 0.0
    %1322 = vmatpush2.msra.mxu0 0.0
    %1323 = vmatprep.subr.mxu0 0.0
    %1324 = vmatpush2.msra.mxu0 0.0
    %1325 = vmatprep.subr.mxu0 0.0
    %1326 = vmatpush2.msra.mxu0 0.0
    %1327 = vmatprep.subr.mxu0 0.0
    %1328 = vmatpush2.msra.mxu0 0.0
    %1329 = vmatprep.subr.mxu0 0.0
    %1330 = vmatpush2.msra.mxu0 0.0
    %1331 = vmatprep.subr.mxu0 0.0
    %1332 = vmatpush2.msra.mxu0 0.0
    %1333 = vmatprep.subr.mxu0 0.0
    %1334 = vmatpush2.msra.mxu0 0.0
    %1335 = vmatprep.subr.mxu0 0.0
    %1336 = vmatpush2.msra.mxu0 0.0
    %1337 = vmatprep.subr.mxu0 0.0
    %1338 = vmatpush2.msra.mxu0 0.0
    %1339 = vmatprep.subr.mxu0 0.0
    %1340 = vmatpush2.msra.mxu0 0.0
    %1341 = vmatprep.mubr.f32.mxu0 0.0
    %1342 = vmatmul.mubr.f32.gmra.mxu0 %v1272
    %v1343 = vpop.f32.mrf.mxu0
    %v1344 = vadd.f32 0.0, %v1343
    %v1345 = vpop.f32.mrf.mxu0
    %v1346 = vadd.f32 0.0, %v1345
    %1347 = vmatprep.mubr.f32.mxu0 0.0
    %1348 = vmatmul.mubr.f32.gmra.mxu0 %v1275
    %v1349 = vpop.f32.mrf.mxu0
    %v1350 = vadd.f32 0.0, %v1349
    %v1351 = vpop.f32.mrf.mxu0
    %v1352 = vadd.f32 0.0, %v1351
    %1353 = vdwg.mxu0
    %v1354 = vadd.f32 %v1236, %v1344
    %v1355 = vadd.f32 %v1237, %v1346
    %v1356 = vadd.f32 %v1238, %v1350
    %v1357 = vadd.f32 %v1239, %v1352
    %v1358 = vld [vmem:[%s4] sm:$0x3]
    %v1360 = vlaneseq
    %v1361 = vshrl.u32 %v1360, 7
    %v1362 = vsub.s32 0, %v1361
    %v1363 = vrot.slane %v1358, %v1362
    %v1364 = vlaneseq
    %v1365 = vshrl.u32 %v1364, 7
    %v1366 = vsub.s32 1, %v1365
    %v1367 = vrot.slane %v1358, %v1366
    %v1370 = vadd.f32 %v1354, %v1363
    %v1371 = vadd.f32 %v1355, %v1367
    %v1372 = vadd.f32 %v1356, %v1363
    %v1373 = vadd.f32 %v1357, %v1367
    %v1374 = vadd.f32 %v1370, %v1372
    %v1375 = vrot.slane %v1374, 4
    %v1376 = vadd.f32 %v1374, %v1375
    %v1377 = vrot.slane %v1376, 2
    %v1378 = vadd.f32 %v1376, %v1377
    %v1379 = vrot.slane %v1378, 1
    %v1380 = vadd.f32 %v1378, %v1379
    %vm1381 = vcmask 261120
    %v1382 = vsel %vm1381, %v1371, 0.0
    %v1383 = vsel %vm1381, %v1373, 0.0
    %v1384 = vadd.f32 %v1382, %v1383
    %v1385 = vrot.slane %v1384, 4
    %v1386 = vadd.f32 %v1384, %v1385
    %v1387 = vrot.slane %v1386, 2
    %v1388 = vadd.f32 %v1386, %v1387
    %v1389 = vrot.slane %v1388, 1
    %v1390 = vadd.f32 %v1388, %v1389
    %v1391 = vld [vmem:[%s9] sm:$0xff]
    %v1392 = vld [vmem:[%s9 + $0x8] sm:$0xff]
    %v1393 = vld [vmem:[%s9 + $0x10] sm:$0xff]
    %v1394 = vld [vmem:[%s9 + $0x18] sm:$0xff]
    %v1395 = vld [vmem:[%s9 + $0x20] sm:$0xff]
    %v1396 = vld [vmem:[%s9 + $0x28] sm:$0xff]
    %v1397 = vld [vmem:[%s9 + $0x30] sm:$0xff]
    %v1398 = vld [vmem:[%s9 + $0x38] sm:$0xff]
    %v1399 = vld [vmem:[%s9 + $0x40] sm:$0xff]
    %v1400 = vld [vmem:[%s9 + $0x48] sm:$0xff]
    %v1401 = vld [vmem:[%s9 + $0x50] sm:$0xff]
    %v1402 = vld [vmem:[%s9 + $0x58] sm:$0xff]
    %v1403 = vld [vmem:[%s9 + $0x60] sm:$0xff]
    %v1404 = vld [vmem:[%s9 + $0x68] sm:$0xff]
    %v1405 = vld [vmem:[%s9 + $0x70] sm:$0xff]
    %v1406 = vld [vmem:[%s9 + $0x78] sm:$0xff]
    %v1407 = vld [vmem:[%s9 + $0x80] sm:$0xff]
    %v1408 = vld [vmem:[%s9 + $0x88] sm:$0xff]
    %v1409 = vld [vmem:[%s9 + $0x90] sm:$0xff]
    %v1410 = vld [vmem:[%s9 + $0x98] sm:$0xff]
    %v1412 = vsel %vm1381, %v1390, 0
    %1414 = vmatprep.subr.mxu0 0.0
    %1415 = vmatpush1.msra.mxu0 %v1406
    %1416 = vmatprep.subr.mxu0 0.0
    %1417 = vmatpush1.msra.mxu0 %v1405
    %1418 = vmatprep.subr.mxu0 0.0
    %1419 = vmatpush1.msra.mxu0 %v1404
    %1420 = vmatprep.subr.mxu0 0.0
    %1421 = vmatpush1.msra.mxu0 %v1403
    %1422 = vmatprep.subr.mxu0 0.0
    %1423 = vmatpush1.msra.mxu0 %v1402
    %1424 = vmatprep.subr.mxu0 0.0
    %1425 = vmatpush1.msra.mxu0 %v1401
    %1426 = vmatprep.subr.mxu0 0.0
    %1427 = vmatpush1.msra.mxu0 %v1400
    %1428 = vmatprep.subr.mxu0 0.0
    %1429 = vmatpush1.msra.mxu0 %v1399
    %1430 = vmatprep.subr.mxu0 0.0
    %1431 = vmatpush1.msra.mxu0 %v1398
    %1432 = vmatprep.subr.mxu0 0.0
    %1433 = vmatpush1.msra.mxu0 %v1397
    %1434 = vmatprep.subr.mxu0 0.0
    %1435 = vmatpush1.msra.mxu0 %v1396
    %1436 = vmatprep.subr.mxu0 0.0
    %1437 = vmatpush1.msra.mxu0 %v1395
    %1438 = vmatprep.subr.mxu0 0.0
    %1439 = vmatpush1.msra.mxu0 %v1394
    %1440 = vmatprep.subr.mxu0 0.0
    %1441 = vmatpush1.msra.mxu0 %v1393
    %1442 = vmatprep.subr.mxu0 0.0
    %1443 = vmatpush1.msra.mxu0 %v1392
    %1444 = vmatprep.subr.mxu0 0.0
    %1445 = vmatpush1.msra.mxu0 %v1391
    %1446 = vmatprep.subr.mxu0 0.0
    %1447 = vmatpush2.msra.mxu0 0.0
    %1448 = vmatprep.subr.mxu0 0.0
    %1449 = vmatpush2.msra.mxu0 0.0
    %1450 = vmatprep.subr.mxu0 0.0
    %1451 = vmatpush2.msra.mxu0 0.0
    %1452 = vmatprep.subr.mxu0 0.0
    %1453 = vmatpush2.msra.mxu0 0.0
    %1454 = vmatprep.subr.mxu0 0.0
    %1455 = vmatpush2.msra.mxu0 0.0
    %1456 = vmatprep.subr.mxu0 0.0
    %1457 = vmatpush2.msra.mxu0 0.0
    %1458 = vmatprep.subr.mxu0 0.0
    %1459 = vmatpush2.msra.mxu0 0.0
    %1460 = vmatprep.subr.mxu0 0.0
    %1461 = vmatpush2.msra.mxu0 0.0
    %1462 = vmatprep.subr.mxu0 0.0
    %1463 = vmatpush2.msra.mxu0 0.0
    %1464 = vmatprep.subr.mxu0 0.0
    %1465 = vmatpush2.msra.mxu0 0.0
    %1466 = vmatprep.subr.mxu0 0.0
    %1467 = vmatpush2.msra.mxu0 0.0
    %1468 = vmatprep.subr.mxu0 0.0
    %1469 = vmatpush2.msra.mxu0 0.0
    %1470 = vmatprep.subr.mxu0 0.0
    %1471 = vmatpush2.msra.mxu0 %v1410
    %1472 = vmatprep.subr.mxu0 0.0
    %1473 = vmatpush2.msra.mxu0 %v1409
    %1474 = vmatprep.subr.mxu0 0.0
    %1475 = vmatpush2.msra.mxu0 %v1408
    %1476 = vmatprep.subr.mxu0 0.0
    %1477 = vmatpush2.msra.mxu0 %v1407
    %1478 = vmatprep.mubr.f32.mxu0 %v1412
    %1479 = vmatmul.mubr.f32.gmra.mxu0 %v1380
    %v1480 = vpop.f32.mrf.mxu0
    %v1481 = vadd.f32 0.0, %v1480
    %v1482 = vpop.f32.mrf.mxu0
    %1483 = vdwg.mxu0
    %v1484 = vmul.f32 %v1370, %v1370
    %v1485 = vmul.f32 %v1371, %v1371
    %v1486 = vmul.f32 %v1372, %v1372
    %v1487 = vmul.f32 %v1373, %v1373
    %v1488 = vadd.f32 %v1484, %v1486
    %v1489 = vrot.slane %v1488, 4
    %v1490 = vadd.f32 %v1488, %v1489
    %v1491 = vrot.slane %v1490, 2
    %v1492 = vadd.f32 %v1490, %v1491
    %v1493 = vrot.slane %v1492, 1
    %v1494 = vadd.f32 %v1492, %v1493
    %v1495 = vsel %vm1381, %v1485, 0.0
    %v1496 = vsel %vm1381, %v1487, 0.0
    %v1497 = vadd.f32 %v1495, %v1496
    %v1498 = vrot.slane %v1497, 4
    %v1499 = vadd.f32 %v1497, %v1498
    %v1500 = vrot.slane %v1499, 2
    %v1501 = vadd.f32 %v1499, %v1500
    %v1502 = vrot.slane %v1501, 1
    %v1503 = vadd.f32 %v1501, %v1502
    %v1505 = vsel %vm1381, %v1503, 0
    %1507 = vmatprep.subr.mxu0 0.0
    %1508 = vmatpush1.msra.mxu0 %v1406
    %1509 = vmatprep.subr.mxu0 0.0
    %1510 = vmatpush1.msra.mxu0 %v1405
    %1511 = vmatprep.subr.mxu0 0.0
    %1512 = vmatpush1.msra.mxu0 %v1404
    %1513 = vmatprep.subr.mxu0 0.0
    %1514 = vmatpush1.msra.mxu0 %v1403
    %1515 = vmatprep.subr.mxu0 0.0
    %1516 = vmatpush1.msra.mxu0 %v1402
    %1517 = vmatprep.subr.mxu0 0.0
    %1518 = vmatpush1.msra.mxu0 %v1401
    %1519 = vmatprep.subr.mxu0 0.0
    %1520 = vmatpush1.msra.mxu0 %v1400
    %1521 = vmatprep.subr.mxu0 0.0
    %1522 = vmatpush1.msra.mxu0 %v1399
    %1523 = vmatprep.subr.mxu0 0.0
    %1524 = vmatpush1.msra.mxu0 %v1398
    %1525 = vmatprep.subr.mxu0 0.0
    %1526 = vmatpush1.msra.mxu0 %v1397
    %1527 = vmatprep.subr.mxu0 0.0
    %1528 = vmatpush1.msra.mxu0 %v1396
    %1529 = vmatprep.subr.mxu0 0.0
    %1530 = vmatpush1.msra.mxu0 %v1395
    %1531 = vmatprep.subr.mxu0 0.0
    %1532 = vmatpush1.msra.mxu0 %v1394
    %1533 = vmatprep.subr.mxu0 0.0
    %1534 = vmatpush1.msra.mxu0 %v1393
    %1535 = vmatprep.subr.mxu0 0.0
    %1536 = vmatpush1.msra.mxu0 %v1392
    %1537 = vmatprep.subr.mxu0 0.0
    %1538 = vmatpush1.msra.mxu0 %v1391
    %1539 = vmatprep.subr.mxu0 0.0
    %1540 = vmatpush2.msra.mxu0 0.0
    %1541 = vmatprep.subr.mxu0 0.0
    %1542 = vmatpush2.msra.mxu0 0.0
    %1543 = vmatprep.subr.mxu0 0.0
    %1544 = vmatpush2.msra.mxu0 0.0
    %1545 = vmatprep.subr.mxu0 0.0
    %1546 = vmatpush2.msra.mxu0 0.0
    %1547 = vmatprep.subr.mxu0 0.0
    %1548 = vmatpush2.msra.mxu0 0.0
    %1549 = vmatprep.subr.mxu0 0.0
    %1550 = vmatpush2.msra.mxu0 0.0
    %1551 = vmatprep.subr.mxu0 0.0
    %1552 = vmatpush2.msra.mxu0 0.0
    %1553 = vmatprep.subr.mxu0 0.0
    %1554 = vmatpush2.msra.mxu0 0.0
    %1555 = vmatprep.subr.mxu0 0.0
    %1556 = vmatpush2.msra.mxu0 0.0
    %1557 = vmatprep.subr.mxu0 0.0
    %1558 = vmatpush2.msra.mxu0 0.0
    %1559 = vmatprep.subr.mxu0 0.0
    %1560 = vmatpush2.msra.mxu0 0.0
    %1561 = vmatprep.subr.mxu0 0.0
    %1562 = vmatpush2.msra.mxu0 0.0
    %1563 = vmatprep.subr.mxu0 0.0
    %1564 = vmatpush2.msra.mxu0 %v1410
    %1565 = vmatprep.subr.mxu0 0.0
    %1566 = vmatpush2.msra.mxu0 %v1409
    %1567 = vmatprep.subr.mxu0 0.0
    %1568 = vmatpush2.msra.mxu0 %v1408
    %1569 = vmatprep.subr.mxu0 0.0
    %1570 = vmatpush2.msra.mxu0 %v1407
    %1571 = vmatprep.mubr.f32.mxu0 %v1505
    %1572 = vmatmul.mubr.f32.gmra.mxu0 %v1494
    %v1573 = vpop.f32.mrf.mxu0
    %v1574 = vadd.f32 0.0, %v1573
    %v1575 = vpop.f32.mrf.mxu0
    %1576 = vdwg.mxu0
    %v1577 = vrcp.pop 128.0
    %v1578 = vmul.f32 %v1481, %v1577
    %v1579 = vmul.f32 %v1574, %v1577
    %v1580 = vmul.f32 %v1578, %v1578
    %v1581 = vsub.f32 %v1579, %v1580
    %v1582 = vmax.f32 %v1581, 0.0
    %v1583 = vld [vmem:[%s11] sm:$0x1]
    %v1584 = vadd.f32 %v1582, 1e-05
    %v1585 = vrsqrt.pop %v1584
    %v1586 = vmul.f32 %v1583, %v1585
    %v1587 = vld [vmem:[%s12] sm:$0x1]
    %v1588 = vmul.f32 %v1578, %v1586
    %v1589 = vsub.f32 %v1587, %v1588
    %v1590 = vld [vmem:[%s10] sm:$0xff]
    %v1591 = vld [vmem:[%s10 + $0x8] sm:$0xff]
    %v1592 = vld [vmem:[%s10 + $0x10] sm:$0xff]
    %v1593 = vld [vmem:[%s10 + $0x18] sm:$0xff]
    %v1594 = vld [vmem:[%s10 + $0x20] sm:$0xf]
    %v1595 = vld [vmem:[%s10 + $0x28] sm:$0xf]
    %vm1596 = vcmask 162816
    %v1598 = vsel %vm1596, %v1586, 0
    %v1601 = vsel %vm130, %v1594, 0
    %v1604 = vsel %vm130, %v1595, 0
    %1606 = vmatprep.subr.mxu0 0.0
    %1607 = vmatpush1.msra.mxu0 0.0
    %1608 = vmatprep.subr.mxu0 0.0
    %1609 = vmatpush1.msra.mxu0 0.0
    %1610 = vmatprep.subr.mxu0 0.0
    %1611 = vmatpush1.msra.mxu0 0.0
    %1612 = vmatprep.subr.mxu0 0.0
    %1613 = vmatpush1.msra.mxu0 0.0
    %1614 = vmatprep.subr.mxu0 0.0
    %1615 = vmatpush1.msra.mxu0 0.0
    %1616 = vmatprep.subr.mxu0 0.0
    %1617 = vmatpush1.msra.mxu0 0.0
    %1618 = vmatprep.subr.mxu0 0.0
    %1619 = vmatpush1.msra.mxu0 0.0
    %1620 = vmatprep.subr.mxu0 0.0
    %1621 = vmatpush1.msra.mxu0 0.0
    %1622 = vmatprep.subr.mxu0 0.0
    %1623 = vmatpush1.msra.mxu0 0.0
    %1624 = vmatprep.subr.mxu0 0.0
    %1625 = vmatpush1.msra.mxu0 0.0
    %1626 = vmatprep.subr.mxu0 0.0
    %1627 = vmatpush1.msra.mxu0 0.0
    %1628 = vmatprep.subr.mxu0 0.0
    %1629 = vmatpush1.msra.mxu0 0.0
    %1630 = vmatprep.subr.mxu0 0.0
    %1631 = vmatpush1.msra.mxu0 0.0
    %1632 = vmatprep.subr.mxu0 %v1604
    %1633 = vmatpush1.msra.mxu0 %v1601
    %1634 = vmatprep.subr.mxu0 %v1593
    %1635 = vmatpush1.msra.mxu0 %v1592
    %1636 = vmatprep.subr.mxu0 %v1591
    %1637 = vmatpush1.msra.mxu0 %v1590
    %1638 = vmatprep.subr.mxu0 0.0
    %1639 = vmatpush2.msra.mxu0 0.0
    %1640 = vmatprep.subr.mxu0 0.0
    %1641 = vmatpush2.msra.mxu0 0.0
    %1642 = vmatprep.subr.mxu0 0.0
    %1643 = vmatpush2.msra.mxu0 0.0
    %1644 = vmatprep.subr.mxu0 0.0
    %1645 = vmatpush2.msra.mxu0 0.0
    %1646 = vmatprep.subr.mxu0 0.0
    %1647 = vmatpush2.msra.mxu0 0.0
    %1648 = vmatprep.subr.mxu0 0.0
    %1649 = vmatpush2.msra.mxu0 0.0
    %1650 = vmatprep.subr.mxu0 0.0
    %1651 = vmatpush2.msra.mxu0 0.0
    %1652 = vmatprep.subr.mxu0 0.0
    %1653 = vmatpush2.msra.mxu0 0.0
    %1654 = vmatprep.subr.mxu0 0.0
    %1655 = vmatpush2.msra.mxu0 0.0
    %1656 = vmatprep.subr.mxu0 0.0
    %1657 = vmatpush2.msra.mxu0 0.0
    %1658 = vmatprep.subr.mxu0 0.0
    %1659 = vmatpush2.msra.mxu0 0.0
    %1660 = vmatprep.subr.mxu0 0.0
    %1661 = vmatpush2.msra.mxu0 0.0
    %1662 = vmatprep.subr.mxu0 0.0
    %1663 = vmatpush2.msra.mxu0 0.0
    %1664 = vmatprep.subr.mxu0 0.0
    %1665 = vmatpush2.msra.mxu0 0.0
    %1666 = vmatprep.subr.mxu0 0.0
    %1667 = vmatpush2.msra.mxu0 0.0
    %1668 = vmatprep.subr.mxu0 0.0
    %1669 = vmatpush2.msra.mxu0 0.0
    %1670 = vmatprep.mubr.f32.mxu0 0.0
    %1671 = vmatmul.mubr.f32.gmra.mxu0 %v1598
    %v1672 = vpop.f32.mrf.mxu0
    %v1673 = vadd.f32 0.0, %v1672
    %v1674 = vpop.f32.mrf.mxu0
    %v1675 = vadd.f32 0.0, %v1674
    %1676 = vdwg.mxu0
    %v1678 = vsel %vm1596, %v1589, 0
    %1680 = vmatprep.subr.mxu0 0.0
    %1681 = vmatpush1.msra.mxu0 0.0
    %1682 = vmatprep.subr.mxu0 0.0
    %1683 = vmatpush1.msra.mxu0 0.0
    %1684 = vmatprep.subr.mxu0 0.0
    %1685 = vmatpush1.msra.mxu0 0.0
    %1686 = vmatprep.subr.mxu0 0.0
    %1687 = vmatpush1.msra.mxu0 0.0
    %1688 = vmatprep.subr.mxu0 0.0
    %1689 = vmatpush1.msra.mxu0 0.0
    %1690 = vmatprep.subr.mxu0 0.0
    %1691 = vmatpush1.msra.mxu0 0.0
    %1692 = vmatprep.subr.mxu0 0.0
    %1693 = vmatpush1.msra.mxu0 0.0
    %1694 = vmatprep.subr.mxu0 0.0
    %1695 = vmatpush1.msra.mxu0 0.0
    %1696 = vmatprep.subr.mxu0 0.0
    %1697 = vmatpush1.msra.mxu0 0.0
    %1698 = vmatprep.subr.mxu0 0.0
    %1699 = vmatpush1.msra.mxu0 0.0
    %1700 = vmatprep.subr.mxu0 0.0
    %1701 = vmatpush1.msra.mxu0 0.0
    %1702 = vmatprep.subr.mxu0 0.0
    %1703 = vmatpush1.msra.mxu0 0.0
    %1704 = vmatprep.subr.mxu0 0.0
    %1705 = vmatpush1.msra.mxu0 0.0
    %1706 = vmatprep.subr.mxu0 %v1604
    %1707 = vmatpush1.msra.mxu0 %v1601
    %1708 = vmatprep.subr.mxu0 %v1593
    %1709 = vmatpush1.msra.mxu0 %v1592
    %1710 = vmatprep.subr.mxu0 %v1591
    %1711 = vmatpush1.msra.mxu0 %v1590
    %1712 = vmatprep.subr.mxu0 0.0
    %1713 = vmatpush2.msra.mxu0 0.0
    %1714 = vmatprep.subr.mxu0 0.0
    %1715 = vmatpush2.msra.mxu0 0.0
    %1716 = vmatprep.subr.mxu0 0.0
    %1717 = vmatpush2.msra.mxu0 0.0
    %1718 = vmatprep.subr.mxu0 0.0
    %1719 = vmatpush2.msra.mxu0 0.0
    %1720 = vmatprep.subr.mxu0 0.0
    %1721 = vmatpush2.msra.mxu0 0.0
    %1722 = vmatprep.subr.mxu0 0.0
    %1723 = vmatpush2.msra.mxu0 0.0
    %1724 = vmatprep.subr.mxu0 0.0
    %1725 = vmatpush2.msra.mxu0 0.0
    %1726 = vmatprep.subr.mxu0 0.0
    %1727 = vmatpush2.msra.mxu0 0.0
    %1728 = vmatprep.subr.mxu0 0.0
    %1729 = vmatpush2.msra.mxu0 0.0
    %1730 = vmatprep.subr.mxu0 0.0
    %1731 = vmatpush2.msra.mxu0 0.0
    %1732 = vmatprep.subr.mxu0 0.0
    %1733 = vmatpush2.msra.mxu0 0.0
    %1734 = vmatprep.subr.mxu0 0.0
    %1735 = vmatpush2.msra.mxu0 0.0
    %1736 = vmatprep.subr.mxu0 0.0
    %1737 = vmatpush2.msra.mxu0 0.0
    %1738 = vmatprep.subr.mxu0 0.0
    %1739 = vmatpush2.msra.mxu0 0.0
    %1740 = vmatprep.subr.mxu0 0.0
    %1741 = vmatpush2.msra.mxu0 0.0
    %1742 = vmatprep.subr.mxu0 0.0
    %1743 = vmatpush2.msra.mxu0 0.0
    %1744 = vmatprep.mubr.f32.mxu0 0.0
    %1745 = vmatmul.mubr.f32.gmra.mxu0 %v1678
    %v1746 = vpop.f32.mrf.mxu0
    %v1747 = vadd.f32 0.0, %v1746
    %v1748 = vpop.f32.mrf.mxu0
    %v1749 = vadd.f32 0.0, %v1748
    %1750 = vdwg.mxu0
    %v1751 = vlaneseq
    %v1752 = vshrl.u32 %v1751, 7
    %v1753 = vsub.s32 0, %v1752
    %v1754 = vrot.slane %v1673, %v1753
    %v1755 = vlaneseq
    %v1756 = vshrl.u32 %v1755, 7
    %v1757 = vsub.s32 0, %v1756
    %v1758 = vrot.slane %v1675, %v1757
    %v1759 = vmul.f32 %v1370, %v1754
    %v1760 = vmul.f32 %v1371, %v1758
    %v1761 = vmul.f32 %v1372, %v1754
    %v1762 = vmul.f32 %v1373, %v1758
    %v1763 = vlaneseq
    %v1764 = vshrl.u32 %v1763, 7
    %v1765 = vsub.s32 0, %v1764
    %v1766 = vrot.slane %v1747, %v1765
    %v1767 = vlaneseq
    %v1768 = vshrl.u32 %v1767, 7
    %v1769 = vsub.s32 0, %v1768
    %v1770 = vrot.slane %v1749, %v1769
    %v1771 = vadd.f32 %v1759, %v1766
    %v1772 = vadd.f32 %v1760, %v1770
    %v1773 = vadd.f32 %v1761, %v1766
    %v1774 = vadd.f32 %v1762, %v1770
    %v1779 = vrot.slane %v1771, 1
    %v1780 = vrot.slane %v1773, 1
    %v1781 = vsel %vm250, %v1779, %v1780
    %v1782 = vrot.slane %v1772, 1
    %v1783 = vrot.slane %v1774, 1
    %v1784 = vsel %vm250, %v1782, %v1783
    %v1789 = vmax.f32 %v1771, %v1781
    %v1790 = vmax.f32 %v1772, %v1784
    %v1791 = vmax.f32 %v1773, %v1780
    %v1792 = vmax.f32 %v1774, %v1783
    %v1793 = vld [vmem:[%s7] sm:$0xff]
    %vm1794 = vcmask 121856
    %v1796 = vsel %vm1794, %v1793, 0
    %v1799 = vsel %vm250, %v1791, 0
    %v1802 = vsel %vm250, %v1792, 0
    %1804 = vmatprep.subr.mxu0 0.0
    %1805 = vmatpush1.msra.mxu0 0.0
    %1806 = vmatprep.subr.mxu0 0.0
    %1807 = vmatpush1.msra.mxu0 0.0
    %1808 = vmatprep.subr.mxu0 0.0
    %1809 = vmatpush1.msra.mxu0 0.0
    %1810 = vmatprep.subr.mxu0 0.0
    %1811 = vmatpush1.msra.mxu0 0.0
    %1812 = vmatprep.subr.mxu0 0.0
    %1813 = vmatpush1.msra.mxu0 0.0
    %1814 = vmatprep.subr.mxu0 0.0
    %1815 = vmatpush1.msra.mxu0 0.0
    %1816 = vmatprep.subr.mxu0 0.0
    %1817 = vmatpush1.msra.mxu0 0.0
    %1818 = vmatprep.subr.mxu0 0.0
    %1819 = vmatpush1.msra.mxu0 0.0
    %1820 = vmatprep.subr.mxu0 0.0
    %1821 = vmatpush1.msra.mxu0 0.0
    %1822 = vmatprep.subr.mxu0 0.0
    %1823 = vmatpush1.msra.mxu0 0.0
    %1824 = vmatprep.subr.mxu0 0.0
    %1825 = vmatpush1.msra.mxu0 0.0
    %1826 = vmatprep.subr.mxu0 0.0
    %1827 = vmatpush1.msra.mxu0 0.0
    %1828 = vmatprep.subr.mxu0 0.0
    %1829 = vmatpush1.msra.mxu0 0.0
    %1830 = vmatprep.subr.mxu0 0.0
    %1831 = vmatpush1.msra.mxu0 0.0
    %1832 = vmatprep.subr.mxu0 %v1802
    %1833 = vmatpush1.msra.mxu0 %v1799
    %1834 = vmatprep.subr.mxu0 %v1790
    %1835 = vmatpush1.msra.mxu0 %v1789
    %1836 = vmatprep.subr.mxu0 0.0
    %1837 = vmatpush2.msra.mxu0 0.0
    %1838 = vmatprep.subr.mxu0 0.0
    %1839 = vmatpush2.msra.mxu0 0.0
    %1840 = vmatprep.subr.mxu0 0.0
    %1841 = vmatpush2.msra.mxu0 0.0
    %1842 = vmatprep.subr.mxu0 0.0
    %1843 = vmatpush2.msra.mxu0 0.0
    %1844 = vmatprep.subr.mxu0 0.0
    %1845 = vmatpush2.msra.mxu0 0.0
    %1846 = vmatprep.subr.mxu0 0.0
    %1847 = vmatpush2.msra.mxu0 0.0
    %1848 = vmatprep.subr.mxu0 0.0
    %1849 = vmatpush2.msra.mxu0 0.0
    %1850 = vmatprep.subr.mxu0 0.0
    %1851 = vmatpush2.msra.mxu0 0.0
    %1852 = vmatprep.subr.mxu0 0.0
    %1853 = vmatpush2.msra.mxu0 0.0
    %1854 = vmatprep.subr.mxu0 0.0
    %1855 = vmatpush2.msra.mxu0 0.0
    %1856 = vmatprep.subr.mxu0 0.0
    %1857 = vmatpush2.msra.mxu0 0.0
    %1858 = vmatprep.subr.mxu0 0.0
    %1859 = vmatpush2.msra.mxu0 0.0
    %1860 = vmatprep.subr.mxu0 0.0
    %1861 = vmatpush2.msra.mxu0 0.0
    %1862 = vmatprep.subr.mxu0 0.0
    %1863 = vmatpush2.msra.mxu0 0.0
    %1864 = vmatprep.subr.mxu0 0.0
    %1865 = vmatpush2.msra.mxu0 0.0
    %1866 = vmatprep.subr.mxu0 0.0
    %1867 = vmatpush2.msra.mxu0 0.0
    %1868 = vmatprep.mubr.f32.mxu0 0.0
    %1869 = vmatmul.mubr.f32.gmra.mxu0 %v1796
    %v1870 = vpop.f32.mrf.mxu0
    %v1871 = vadd.f32 0.0, %v1870
    %v1872 = vpop.f32.mrf.mxu0
    %v1873 = vadd.f32 0.0, %v1872
    %1874 = vdwg.mxu0
    %1877 = vrot.lane.b32.xlu0 %v1871, 108
    %v1878 = vpop.permute.xlu0 %1877
    %1879 = vrot.lane.b32.xlu0 %v1873, 108
    %v1880 = vpop.permute.xlu0 %1879
    %vm1881 = vcmask 883712
    %v1882 = vsel %vm1881, %v1878, %v1880
    %v1885 = vmax.f32 %v1871, %v1882
    %v1886 = vmax.f32 %v1873, %v1880
    %v1887 = vld [vmem:[%s8] sm:$0xff]
    %v1888 = vld [vmem:[%s8 + $0x8] sm:$0xff]
    %v1889 = vld [vmem:[%s8 + $0x10] sm:$0xff]
    %v1890 = vld [vmem:[%s8 + $0x18] sm:$0xff]
    %v1891 = vld [vmem:[%s8 + $0x20] sm:$0xff]
    %v1892 = vld [vmem:[%s8 + $0x28] sm:$0xff]
    %v1893 = vld [vmem:[%s8 + $0x30] sm:$0xff]
    %v1894 = vld [vmem:[%s8 + $0x38] sm:$0xff]
    %v1895 = vld [vmem:[%s8 + $0x40] sm:$0xff]
    %v1896 = vld [vmem:[%s8 + $0x48] sm:$0xff]
    %v1897 = vld [vmem:[%s8 + $0x50] sm:$0xff]
    %v1898 = vld [vmem:[%s8 + $0x58] sm:$0xff]
    %v1899 = vld [vmem:[%s8 + $0x60] sm:$0xff]
    %v1900 = vld [vmem:[%s8 + $0x68] sm:$0xff]
    %v1901 = vld [vmem:[%s8 + $0x70] sm:$0xff]
    %v1902 = vld [vmem:[%s8 + $0x78] sm:$0xff]
    %v1903 = vld [vmem:[%s8 + $0x80] sm:$0xff]
    %v1904 = vld [vmem:[%s8 + $0x88] sm:$0xf]
    %v1906 = vsel %vm111, %v1886, 0
    %v1909 = vsel %vm130, %v1904, 0
    %1911 = vmatprep.subr.mxu0 0.0
    %1912 = vmatpush1.msra.mxu0 %v1902
    %1913 = vmatprep.subr.mxu0 0.0
    %1914 = vmatpush1.msra.mxu0 %v1901
    %1915 = vmatprep.subr.mxu0 0.0
    %1916 = vmatpush1.msra.mxu0 %v1900
    %1917 = vmatprep.subr.mxu0 0.0
    %1918 = vmatpush1.msra.mxu0 %v1899
    %1919 = vmatprep.subr.mxu0 0.0
    %1920 = vmatpush1.msra.mxu0 %v1898
    %1921 = vmatprep.subr.mxu0 0.0
    %1922 = vmatpush1.msra.mxu0 %v1897
    %1923 = vmatprep.subr.mxu0 0.0
    %1924 = vmatpush1.msra.mxu0 %v1896
    %1925 = vmatprep.subr.mxu0 0.0
    %1926 = vmatpush1.msra.mxu0 %v1895
    %1927 = vmatprep.subr.mxu0 0.0
    %1928 = vmatpush1.msra.mxu0 %v1894
    %1929 = vmatprep.subr.mxu0 0.0
    %1930 = vmatpush1.msra.mxu0 %v1893
    %1931 = vmatprep.subr.mxu0 0.0
    %1932 = vmatpush1.msra.mxu0 %v1892
    %1933 = vmatprep.subr.mxu0 0.0
    %1934 = vmatpush1.msra.mxu0 %v1891
    %1935 = vmatprep.subr.mxu0 0.0
    %1936 = vmatpush1.msra.mxu0 %v1890
    %1937 = vmatprep.subr.mxu0 0.0
    %1938 = vmatpush1.msra.mxu0 %v1889
    %1939 = vmatprep.subr.mxu0 0.0
    %1940 = vmatpush1.msra.mxu0 %v1888
    %1941 = vmatprep.subr.mxu0 0.0
    %1942 = vmatpush1.msra.mxu0 %v1887
    %1943 = vmatprep.subr.mxu0 0.0
    %1944 = vmatpush2.msra.mxu0 0.0
    %1945 = vmatprep.subr.mxu0 0.0
    %1946 = vmatpush2.msra.mxu0 0.0
    %1947 = vmatprep.subr.mxu0 0.0
    %1948 = vmatpush2.msra.mxu0 0.0
    %1949 = vmatprep.subr.mxu0 0.0
    %1950 = vmatpush2.msra.mxu0 0.0
    %1951 = vmatprep.subr.mxu0 0.0
    %1952 = vmatpush2.msra.mxu0 0.0
    %1953 = vmatprep.subr.mxu0 0.0
    %1954 = vmatpush2.msra.mxu0 0.0
    %1955 = vmatprep.subr.mxu0 0.0
    %1956 = vmatpush2.msra.mxu0 0.0
    %1957 = vmatprep.subr.mxu0 0.0
    %1958 = vmatpush2.msra.mxu0 0.0
    %1959 = vmatprep.subr.mxu0 0.0
    %1960 = vmatpush2.msra.mxu0 0.0
    %1961 = vmatprep.subr.mxu0 0.0
    %1962 = vmatpush2.msra.mxu0 0.0
    %1963 = vmatprep.subr.mxu0 0.0
    %1964 = vmatpush2.msra.mxu0 0.0
    %1965 = vmatprep.subr.mxu0 0.0
    %1966 = vmatpush2.msra.mxu0 0.0
    %1967 = vmatprep.subr.mxu0 0.0
    %1968 = vmatpush2.msra.mxu0 0.0
    %1969 = vmatprep.subr.mxu0 0.0
    %1970 = vmatpush2.msra.mxu0 0.0
    %1971 = vmatprep.subr.mxu0 0.0
    %1972 = vmatpush2.msra.mxu0 %v1909
    %1973 = vmatprep.subr.mxu0 0.0
    %1974 = vmatpush2.msra.mxu0 %v1903
    %1975 = vmatprep.mubr.f32.mxu0 %v1906
    %1976 = vmatmul.mubr.f32.gmra.mxu0 %v1885
    %v1977 = vpop.f32.mrf.mxu0
    %v1978 = vadd.f32 0.0, %v1977
    %v1979 = vpop.f32.mrf.mxu0
    %1980 = vdwg.mxu0
    %v1981 = vmax.f32 %v1978, 0.0
    %v1982 = vld [vmem:[%s14] sm:$0x1]
    %v1983 = vld [vmem:[%s13] sm:$0xff]
    %v1984 = vld [vmem:[%s13 + $0x8] sm:$0xff]
    %v1985 = vld [vmem:[%s13 + $0x10] sm:$0xff]
    %v1986 = vld [vmem:[%s13 + $0x18] sm:$0xff]
    %v1987 = vld [vmem:[%s13 + $0x20] sm:$0xff]
    %v1988 = vld [vmem:[%s13 + $0x28] sm:$0xff]
    %v1989 = vld [vmem:[%s13 + $0x30] sm:$0xff]
    %v1990 = vld [vmem:[%s13 + $0x38] sm:$0xff]
    %v1991 = vld [vmem:[%s13 + $0x40] sm:$0xff]
    %v1992 = vld [vmem:[%s13 + $0x48] sm:$0xff]
    %vm1993 = vcmask 654336
    %v1995 = vsel %vm1993, %v1981, 0
    %1997 = vmatprep.subr.mxu0 0.0
    %1998 = vmatpush1.msra.mxu0 0.0
    %1999 = vmatprep.subr.mxu0 0.0
    %2000 = vmatpush1.msra.mxu0 0.0
    %2001 = vmatprep.subr.mxu0 0.0
    %2002 = vmatpush1.msra.mxu0 0.0
    %2003 = vmatprep.subr.mxu0 0.0
    %2004 = vmatpush1.msra.mxu0 0.0
    %2005 = vmatprep.subr.mxu0 0.0
    %2006 = vmatpush1.msra.mxu0 0.0
    %2007 = vmatprep.subr.mxu0 0.0
    %2008 = vmatpush1.msra.mxu0 0.0
    %2009 = vmatprep.subr.mxu0 0.0
    %2010 = vmatpush1.msra.mxu0 %v1992
    %2011 = vmatprep.subr.mxu0 0.0
    %2012 = vmatpush1.msra.mxu0 %v1991
    %2013 = vmatprep.subr.mxu0 0.0
    %2014 = vmatpush1.msra.mxu0 %v1990
    %2015 = vmatprep.subr.mxu0 0.0
    %2016 = vmatpush1.msra.mxu0 %v1989
    %2017 = vmatprep.subr.mxu0 0.0
    %2018 = vmatpush1.msra.mxu0 %v1988
    %2019 = vmatprep.subr.mxu0 0.0
    %2020 = vmatpush1.msra.mxu0 %v1987
    %2021 = vmatprep.subr.mxu0 0.0
    %2022 = vmatpush1.msra.mxu0 %v1986
    %2023 = vmatprep.subr.mxu0 0.0
    %2024 = vmatpush1.msra.mxu0 %v1985
    %2025 = vmatprep.subr.mxu0 0.0
    %2026 = vmatpush1.msra.mxu0 %v1984
    %2027 = vmatprep.subr.mxu0 0.0
    %2028 = vmatpush1.msra.mxu0 %v1983
    %2029 = vmatprep.subr.mxu0 0.0
    %2030 = vmatpush2.msra.mxu0 0.0
    %2031 = vmatprep.subr.mxu0 0.0
    %2032 = vmatpush2.msra.mxu0 0.0
    %2033 = vmatprep.subr.mxu0 0.0
    %2034 = vmatpush2.msra.mxu0 0.0
    %2035 = vmatprep.subr.mxu0 0.0
    %2036 = vmatpush2.msra.mxu0 0.0
    %2037 = vmatprep.subr.mxu0 0.0
    %2038 = vmatpush2.msra.mxu0 0.0
    %2039 = vmatprep.subr.mxu0 0.0
    %2040 = vmatpush2.msra.mxu0 0.0
    %2041 = vmatprep.subr.mxu0 0.0
    %2042 = vmatpush2.msra.mxu0 0.0
    %2043 = vmatprep.subr.mxu0 0.0
    %2044 = vmatpush2.msra.mxu0 0.0
    %2045 = vmatprep.subr.mxu0 0.0
    %2046 = vmatpush2.msra.mxu0 0.0
    %2047 = vmatprep.subr.mxu0 0.0
    %2048 = vmatpush2.msra.mxu0 0.0
    %2049 = vmatprep.subr.mxu0 0.0
    %2050 = vmatpush2.msra.mxu0 0.0
    %2051 = vmatprep.subr.mxu0 0.0
    %2052 = vmatpush2.msra.mxu0 0.0
    %2053 = vmatprep.subr.mxu0 0.0
    %2054 = vmatpush2.msra.mxu0 0.0
    %2055 = vmatprep.subr.mxu0 0.0
    %2056 = vmatpush2.msra.mxu0 0.0
    %2057 = vmatprep.subr.mxu0 0.0
    %2058 = vmatpush2.msra.mxu0 0.0
    %2059 = vmatprep.subr.mxu0 0.0
    %2060 = vmatpush2.msra.mxu0 0.0
    %2061 = vmatprep.mubr.f32.mxu0 0.0
    %2062 = vmatmul.mubr.f32.gmra.mxu0 %v1995
    %v2063 = vpop.f32.mrf.mxu0
    %v2064 = vadd.f32 0.0, %v2063
    %v2065 = vpop.f32.mrf.mxu0
    %2066 = vdwg.mxu0
    %v2068 = vlaneseq
    %v2069 = vshrl.u32 %v2068, 7
    %v2070 = vsub.s32 0, %v2069
    %v2071 = vrot.slane %v1982, %v2070
    %v2073 = vadd.f32 %v2071, %v2064
    %s2074 = scalar_lea.vmem %s13, 80
    %v2075 = vld [vmem:[%s2074] sm:$0xff]
    %v2076 = vld [vmem:[%s2074 + $0x8] sm:$0xff]
    %v2077 = vld [vmem:[%s2074 + $0x10] sm:$0xff]
    %v2078 = vld [vmem:[%s2074 + $0x18] sm:$0xff]
    %v2079 = vld [vmem:[%s2074 + $0x20] sm:$0xff]
    %v2080 = vld [vmem:[%s2074 + $0x28] sm:$0xff]
    %v2081 = vld [vmem:[%s2074 + $0x30] sm:$0xff]
    %v2082 = vld [vmem:[%s2074 + $0x38] sm:$0xff]
    %v2083 = vld [vmem:[%s2074 + $0x40] sm:$0xff]
    %v2084 = vld [vmem:[%s2074 + $0x48] sm:$0xff]
    %v2085 = vrot.slane %v1981, 2
    %v2086 = vsel %vm1993, %v2085, 0
    %2088 = vmatprep.subr.mxu0 0.0
    %2089 = vmatpush1.msra.mxu0 0.0
    %2090 = vmatprep.subr.mxu0 0.0
    %2091 = vmatpush1.msra.mxu0 0.0
    %2092 = vmatprep.subr.mxu0 0.0
    %2093 = vmatpush1.msra.mxu0 0.0
    %2094 = vmatprep.subr.mxu0 0.0
    %2095 = vmatpush1.msra.mxu0 0.0
    %2096 = vmatprep.subr.mxu0 0.0
    %2097 = vmatpush1.msra.mxu0 0.0
    %2098 = vmatprep.subr.mxu0 0.0
    %2099 = vmatpush1.msra.mxu0 0.0
    %2100 = vmatprep.subr.mxu0 0.0
    %2101 = vmatpush1.msra.mxu0 %v2084
    %2102 = vmatprep.subr.mxu0 0.0
    %2103 = vmatpush1.msra.mxu0 %v2083
    %2104 = vmatprep.subr.mxu0 0.0
    %2105 = vmatpush1.msra.mxu0 %v2082
    %2106 = vmatprep.subr.mxu0 0.0
    %2107 = vmatpush1.msra.mxu0 %v2081
    %2108 = vmatprep.subr.mxu0 0.0
    %2109 = vmatpush1.msra.mxu0 %v2080
    %2110 = vmatprep.subr.mxu0 0.0
    %2111 = vmatpush1.msra.mxu0 %v2079
    %2112 = vmatprep.subr.mxu0 0.0
    %2113 = vmatpush1.msra.mxu0 %v2078
    %2114 = vmatprep.subr.mxu0 0.0
    %2115 = vmatpush1.msra.mxu0 %v2077
    %2116 = vmatprep.subr.mxu0 0.0
    %2117 = vmatpush1.msra.mxu0 %v2076
    %2118 = vmatprep.subr.mxu0 0.0
    %2119 = vmatpush1.msra.mxu0 %v2075
    %2120 = vmatprep.subr.mxu0 0.0
    %2121 = vmatpush2.msra.mxu0 0.0
    %2122 = vmatprep.subr.mxu0 0.0
    %2123 = vmatpush2.msra.mxu0 0.0
    %2124 = vmatprep.subr.mxu0 0.0
    %2125 = vmatpush2.msra.mxu0 0.0
    %2126 = vmatprep.subr.mxu0 0.0
    %2127 = vmatpush2.msra.mxu0 0.0
    %2128 = vmatprep.subr.mxu0 0.0
    %2129 = vmatpush2.msra.mxu0 0.0
    %2130 = vmatprep.subr.mxu0 0.0
    %2131 = vmatpush2.msra.mxu0 0.0
    %2132 = vmatprep.subr.mxu0 0.0
    %2133 = vmatpush2.msra.mxu0 0.0
    %2134 = vmatprep.subr.mxu0 0.0
    %2135 = vmatpush2.msra.mxu0 0.0
    %2136 = vmatprep.subr.mxu0 0.0
    %2137 = vmatpush2.msra.mxu0 0.0
    %2138 = vmatprep.subr.mxu0 0.0
    %2139 = vmatpush2.msra.mxu0 0.0
    %2140 = vmatprep.subr.mxu0 0.0
    %2141 = vmatpush2.msra.mxu0 0.0
    %2142 = vmatprep.subr.mxu0 0.0
    %2143 = vmatpush2.msra.mxu0 0.0
    %2144 = vmatprep.subr.mxu0 0.0
    %2145 = vmatpush2.msra.mxu0 0.0
    %2146 = vmatprep.subr.mxu0 0.0
    %2147 = vmatpush2.msra.mxu0 0.0
    %2148 = vmatprep.subr.mxu0 0.0
    %2149 = vmatpush2.msra.mxu0 0.0
    %2150 = vmatprep.subr.mxu0 0.0
    %2151 = vmatpush2.msra.mxu0 0.0
    %2152 = vmatprep.mubr.f32.mxu0 0.0
    %2153 = vmatmul.mubr.f32.gmra.mxu0 %v2086
    %v2154 = vpop.f32.mrf.mxu0
    %v2155 = vadd.f32 0.0, %v2154
    %v2156 = vpop.f32.mrf.mxu0
    %2157 = vdwg.mxu0
    %v2158 = vadd.f32 %v2073, %v2155
    %s2159 = scalar_lea.vmem %s13, 160
    %v2160 = vld [vmem:[%s2159] sm:$0xff]
    %v2161 = vld [vmem:[%s2159 + $0x8] sm:$0xff]
    %v2162 = vld [vmem:[%s2159 + $0x10] sm:$0xff]
    %v2163 = vld [vmem:[%s2159 + $0x18] sm:$0xff]
    %v2164 = vld [vmem:[%s2159 + $0x20] sm:$0xff]
    %v2165 = vld [vmem:[%s2159 + $0x28] sm:$0xff]
    %v2166 = vld [vmem:[%s2159 + $0x30] sm:$0xff]
    %v2167 = vld [vmem:[%s2159 + $0x38] sm:$0xff]
    %v2168 = vld [vmem:[%s2159 + $0x40] sm:$0xff]
    %v2169 = vld [vmem:[%s2159 + $0x48] sm:$0xff]
    %v2170 = vrot.slane %v1981, 4
    %v2171 = vsel %vm1993, %v2170, 0
    %2173 = vmatprep.subr.mxu0 0.0
    %2174 = vmatpush1.msra.mxu0 0.0
    %2175 = vmatprep.subr.mxu0 0.0
    %2176 = vmatpush1.msra.mxu0 0.0
    %2177 = vmatprep.subr.mxu0 0.0
    %2178 = vmatpush1.msra.mxu0 0.0
    %2179 = vmatprep.subr.mxu0 0.0
    %2180 = vmatpush1.msra.mxu0 0.0
    %2181 = vmatprep.subr.mxu0 0.0
    %2182 = vmatpush1.msra.mxu0 0.0
    %2183 = vmatprep.subr.mxu0 0.0
    %2184 = vmatpush1.msra.mxu0 0.0
    %2185 = vmatprep.subr.mxu0 0.0
    %2186 = vmatpush1.msra.mxu0 %v2169
    %2187 = vmatprep.subr.mxu0 0.0
    %2188 = vmatpush1.msra.mxu0 %v2168
    %2189 = vmatprep.subr.mxu0 0.0
    %2190 = vmatpush1.msra.mxu0 %v2167
    %2191 = vmatprep.subr.mxu0 0.0
    %2192 = vmatpush1.msra.mxu0 %v2166
    %2193 = vmatprep.subr.mxu0 0.0
    %2194 = vmatpush1.msra.mxu0 %v2165
    %2195 = vmatprep.subr.mxu0 0.0
    %2196 = vmatpush1.msra.mxu0 %v2164
    %2197 = vmatprep.subr.mxu0 0.0
    %2198 = vmatpush1.msra.mxu0 %v2163
    %2199 = vmatprep.subr.mxu0 0.0
    %2200 = vmatpush1.msra.mxu0 %v2162
    %2201 = vmatprep.subr.mxu0 0.0
    %2202 = vmatpush1.msra.mxu0 %v2161
    %2203 = vmatprep.subr.mxu0 0.0
    %2204 = vmatpush1.msra.mxu0 %v2160
    %2205 = vmatprep.subr.mxu0 0.0
    %2206 = vmatpush2.msra.mxu0 0.0
    %2207 = vmatprep.subr.mxu0 0.0
    %2208 = vmatpush2.msra.mxu0 0.0
    %2209 = vmatprep.subr.mxu0 0.0
    %2210 = vmatpush2.msra.mxu0 0.0
    %2211 = vmatprep.subr.mxu0 0.0
    %2212 = vmatpush2.msra.mxu0 0.0
    %2213 = vmatprep.subr.mxu0 0.0
    %2214 = vmatpush2.msra.mxu0 0.0
    %2215 = vmatprep.subr.mxu0 0.0
    %2216 = vmatpush2.msra.mxu0 0.0
    %2217 = vmatprep.subr.mxu0 0.0
    %2218 = vmatpush2.msra.mxu0 0.0
    %2219 = vmatprep.subr.mxu0 0.0
    %2220 = vmatpush2.msra.mxu0 0.0
    %2221 = vmatprep.subr.mxu0 0.0
    %2222 = vmatpush2.msra.mxu0 0.0
    %2223 = vmatprep.subr.mxu0 0.0
    %2224 = vmatpush2.msra.mxu0 0.0
    %2225 = vmatprep.subr.mxu0 0.0
    %2226 = vmatpush2.msra.mxu0 0.0
    %2227 = vmatprep.subr.mxu0 0.0
    %2228 = vmatpush2.msra.mxu0 0.0
    %2229 = vmatprep.subr.mxu0 0.0
    %2230 = vmatpush2.msra.mxu0 0.0
    %2231 = vmatprep.subr.mxu0 0.0
    %2232 = vmatpush2.msra.mxu0 0.0
    %2233 = vmatprep.subr.mxu0 0.0
    %2234 = vmatpush2.msra.mxu0 0.0
    %2235 = vmatprep.subr.mxu0 0.0
    %2236 = vmatpush2.msra.mxu0 0.0
    %2237 = vmatprep.mubr.f32.mxu0 0.0
    %2238 = vmatmul.mubr.f32.gmra.mxu0 %v2171
    %v2239 = vpop.f32.mrf.mxu0
    %v2240 = vadd.f32 0.0, %v2239
    %v2241 = vpop.f32.mrf.mxu0
    %2242 = vdwg.mxu0
    %v2243 = vadd.f32 %v2158, %v2240
    %s2244 = scalar_lea.vmem %s13, 240
    %v2245 = vld [vmem:[%s2244] sm:$0xff]
    %v2246 = vld [vmem:[%s2244 + $0x8] sm:$0xff]
    %v2247 = vld [vmem:[%s2244 + $0x10] sm:$0xff]
    %v2248 = vld [vmem:[%s2244 + $0x18] sm:$0xff]
    %v2249 = vld [vmem:[%s2244 + $0x20] sm:$0xff]
    %v2250 = vld [vmem:[%s2244 + $0x28] sm:$0xff]
    %v2251 = vld [vmem:[%s2244 + $0x30] sm:$0xff]
    %v2252 = vld [vmem:[%s2244 + $0x38] sm:$0xff]
    %v2253 = vld [vmem:[%s2244 + $0x40] sm:$0xff]
    %v2254 = vld [vmem:[%s2244 + $0x48] sm:$0xff]
    %v2255 = vrot.slane %v1981, 6
    %v2256 = vsel %vm1993, %v2255, 0
    %2258 = vmatprep.subr.mxu0 0.0
    %2259 = vmatpush1.msra.mxu0 0.0
    %2260 = vmatprep.subr.mxu0 0.0
    %2261 = vmatpush1.msra.mxu0 0.0
    %2262 = vmatprep.subr.mxu0 0.0
    %2263 = vmatpush1.msra.mxu0 0.0
    %2264 = vmatprep.subr.mxu0 0.0
    %2265 = vmatpush1.msra.mxu0 0.0
    %2266 = vmatprep.subr.mxu0 0.0
    %2267 = vmatpush1.msra.mxu0 0.0
    %2268 = vmatprep.subr.mxu0 0.0
    %2269 = vmatpush1.msra.mxu0 0.0
    %2270 = vmatprep.subr.mxu0 0.0
    %2271 = vmatpush1.msra.mxu0 %v2254
    %2272 = vmatprep.subr.mxu0 0.0
    %2273 = vmatpush1.msra.mxu0 %v2253
    %2274 = vmatprep.subr.mxu0 0.0
    %2275 = vmatpush1.msra.mxu0 %v2252
    %2276 = vmatprep.subr.mxu0 0.0
    %2277 = vmatpush1.msra.mxu0 %v2251
    %2278 = vmatprep.subr.mxu0 0.0
    %2279 = vmatpush1.msra.mxu0 %v2250
    %2280 = vmatprep.subr.mxu0 0.0
    %2281 = vmatpush1.msra.mxu0 %v2249
    %2282 = vmatprep.subr.mxu0 0.0
    %2283 = vmatpush1.msra.mxu0 %v2248
    %2284 = vmatprep.subr.mxu0 0.0
    %2285 = vmatpush1.msra.mxu0 %v2247
    %2286 = vmatprep.subr.mxu0 0.0
    %2287 = vmatpush1.msra.mxu0 %v2246
    %2288 = vmatprep.subr.mxu0 0.0
    %2289 = vmatpush1.msra.mxu0 %v2245
    %2290 = vmatprep.subr.mxu0 0.0
    %2291 = vmatpush2.msra.mxu0 0.0
    %2292 = vmatprep.subr.mxu0 0.0
    %2293 = vmatpush2.msra.mxu0 0.0
    %2294 = vmatprep.subr.mxu0 0.0
    %2295 = vmatpush2.msra.mxu0 0.0
    %2296 = vmatprep.subr.mxu0 0.0
    %2297 = vmatpush2.msra.mxu0 0.0
    %2298 = vmatprep.subr.mxu0 0.0
    %2299 = vmatpush2.msra.mxu0 0.0
    %2300 = vmatprep.subr.mxu0 0.0
    %2301 = vmatpush2.msra.mxu0 0.0
    %2302 = vmatprep.subr.mxu0 0.0
    %2303 = vmatpush2.msra.mxu0 0.0
    %2304 = vmatprep.subr.mxu0 0.0
    %2305 = vmatpush2.msra.mxu0 0.0
    %2306 = vmatprep.subr.mxu0 0.0
    %2307 = vmatpush2.msra.mxu0 0.0
    %2308 = vmatprep.subr.mxu0 0.0
    %2309 = vmatpush2.msra.mxu0 0.0
    %2310 = vmatprep.subr.mxu0 0.0
    %2311 = vmatpush2.msra.mxu0 0.0
    %2312 = vmatprep.subr.mxu0 0.0
    %2313 = vmatpush2.msra.mxu0 0.0
    %2314 = vmatprep.subr.mxu0 0.0
    %2315 = vmatpush2.msra.mxu0 0.0
    %2316 = vmatprep.subr.mxu0 0.0
    %2317 = vmatpush2.msra.mxu0 0.0
    %2318 = vmatprep.subr.mxu0 0.0
    %2319 = vmatpush2.msra.mxu0 0.0
    %2320 = vmatprep.subr.mxu0 0.0
    %2321 = vmatpush2.msra.mxu0 0.0
    %2322 = vmatprep.mubr.f32.mxu0 0.0
    %2323 = vmatmul.mubr.f32.gmra.mxu0 %v2256
    %v2324 = vpop.f32.mrf.mxu0
    %v2325 = vadd.f32 0.0, %v2324
    %v2326 = vpop.f32.mrf.mxu0
    %2327 = vdwg.mxu0
    %v2328 = vadd.f32 %v2243, %v2325
    %vm2329 = vcmask 402432
    %v2330 = vsel %vm2329, %v2328, 0.0
    %v2331 = vrot.slane %v2330, 4
    %v2332 = vadd.f32 %v2330, %v2331
    %v2333 = vrot.slane %v2332, 2
    %v2334 = vadd.f32 %v2332, %v2333
    %v2335 = vrot.slane %v2334, 1
    %v2336 = vadd.f32 %v2334, %v2335
    %v2337 = vrcp.pop 2.0
    %v2338 = vmul.f32 %v2336, %v2337
    %v2339 = vsub.f32 %v2328, %v2338
    %v2340 = vmul.f32 %v2339, %v2339
    %v2341 = vsel %vm2329, %v2340, 0.0
    %v2342 = vrot.slane %v2341, 4
    %v2343 = vadd.f32 %v2341, %v2342
    %v2344 = vrot.slane %v2343, 2
    %v2345 = vadd.f32 %v2343, %v2344
    %v2346 = vrot.slane %v2345, 1
    %v2347 = vadd.f32 %v2345, %v2346
    %v2348 = vmul.f32 %v2347, %v2337
    %v2349 = vadd.f32 %v2348, 1e-05
    %v2350 = vrsqrt.pop %v2349
    %v2351 = vmul.f32 %v2339, %v2350
    %v2352 = vld [vmem:[%s15] sm:$0x1]
    %v2354 = vlaneseq
    %v2355 = vshrl.u32 %v2354, 7
    %v2356 = vsub.s32 0, %v2355
    %v2357 = vrot.slane %v2352, %v2356
    %v2359 = vmul.f32 %v2351, %v2357
    %v2360 = vld [vmem:[%s16] sm:$0x1]
    %v2362 = vlaneseq
    %v2363 = vshrl.u32 %v2362, 7
    %v2364 = vsub.s32 0, %v2363
    %v2365 = vrot.slane %v2360, %v2364
    %v2367 = vadd.f32 %v2359, %v2365
    %v2368 = vmax.f32 %v2367, 0.0
    %v2369 = vld [vmem:[%s17] sm:$0xff]
    %v2370 = vld [vmem:[%s17 + $0x8] sm:$0xff]
    %v2371 = vld [vmem:[%s17 + $0x10] sm:$0xff]
    %v2372 = vld [vmem:[%s17 + $0x18] sm:$0xff]
    %v2373 = vld [vmem:[%s17 + $0x20] sm:$0xff]
    %v2374 = vld [vmem:[%s17 + $0x28] sm:$0xff]
    %v2375 = vld [vmem:[%s17 + $0x30] sm:$0x3]
    %v2376 = vld [vmem:[%s18] sm:$0x1]
    %v2378 = vlaneseq
    %v2379 = vshrl.u32 %v2378, 7
    %v2380 = vsub.s32 0, %v2379
    %v2381 = vrot.slane %v2376, %v2380
    %vm2383 = vcmask 408576
    %v2385 = vsel %vm2383, %v2368, 0
    %vm2387 = vcmask 1041408
    %v2389 = vsel %vm2387, %v2375, 0
    %2391 = vmatprep.subr.mxu0 0.0
    %2392 = vmatpush1.msra.mxu0 0.0
    %2393 = vmatprep.subr.mxu0 0.0
    %2394 = vmatpush1.msra.mxu0 0.0
    %2395 = vmatprep.subr.mxu0 0.0
    %2396 = vmatpush1.msra.mxu0 0.0
    %2397 = vmatprep.subr.mxu0 0.0
    %2398 = vmatpush1.msra.mxu0 0.0
    %2399 = vmatprep.subr.mxu0 0.0
    %2400 = vmatpush1.msra.mxu0 0.0
    %2401 = vmatprep.subr.mxu0 0.0
    %2402 = vmatpush1.msra.mxu0 0.0
    %2403 = vmatprep.subr.mxu0 0.0
    %2404 = vmatpush1.msra.mxu0 0.0
    %2405 = vmatprep.subr.mxu0 0.0
    %2406 = vmatpush1.msra.mxu0 0.0
    %2407 = vmatprep.subr.mxu0 0.0
    %2408 = vmatpush1.msra.mxu0 0.0
    %2409 = vmatprep.subr.mxu0 0.0
    %2410 = vmatpush1.msra.mxu0 %v2389
    %2411 = vmatprep.subr.mxu0 0.0
    %2412 = vmatpush1.msra.mxu0 %v2374
    %2413 = vmatprep.subr.mxu0 0.0
    %2414 = vmatpush1.msra.mxu0 %v2373
    %2415 = vmatprep.subr.mxu0 0.0
    %2416 = vmatpush1.msra.mxu0 %v2372
    %2417 = vmatprep.subr.mxu0 0.0
    %2418 = vmatpush1.msra.mxu0 %v2371
    %2419 = vmatprep.subr.mxu0 0.0
    %2420 = vmatpush1.msra.mxu0 %v2370
    %2421 = vmatprep.subr.mxu0 0.0
    %2422 = vmatpush1.msra.mxu0 %v2369
    %2423 = vmatprep.subr.mxu0 0.0
    %2424 = vmatpush2.msra.mxu0 0.0
    %2425 = vmatprep.subr.mxu0 0.0
    %2426 = vmatpush2.msra.mxu0 0.0
    %2427 = vmatprep.subr.mxu0 0.0
    %2428 = vmatpush2.msra.mxu0 0.0
    %2429 = vmatprep.subr.mxu0 0.0
    %2430 = vmatpush2.msra.mxu0 0.0
    %2431 = vmatprep.subr.mxu0 0.0
    %2432 = vmatpush2.msra.mxu0 0.0
    %2433 = vmatprep.subr.mxu0 0.0
    %2434 = vmatpush2.msra.mxu0 0.0
    %2435 = vmatprep.subr.mxu0 0.0
    %2436 = vmatpush2.msra.mxu0 0.0
    %2437 = vmatprep.subr.mxu0 0.0
    %2438 = vmatpush2.msra.mxu0 0.0
    %2439 = vmatprep.subr.mxu0 0.0
    %2440 = vmatpush2.msra.mxu0 0.0
    %2441 = vmatprep.subr.mxu0 0.0
    %2442 = vmatpush2.msra.mxu0 0.0
    %2443 = vmatprep.subr.mxu0 0.0
    %2444 = vmatpush2.msra.mxu0 0.0
    %2445 = vmatprep.subr.mxu0 0.0
    %2446 = vmatpush2.msra.mxu0 0.0
    %2447 = vmatprep.subr.mxu0 0.0
    %2448 = vmatpush2.msra.mxu0 0.0
    %2449 = vmatprep.subr.mxu0 0.0
    %2450 = vmatpush2.msra.mxu0 0.0
    %2451 = vmatprep.subr.mxu0 0.0
    %2452 = vmatpush2.msra.mxu0 0.0
    %2453 = vmatprep.subr.mxu0 0.0
    %2454 = vmatpush2.msra.mxu0 0.0
    %2455 = vmatprep.mubr.f32.mxu0 0.0
    %2456 = vmatmul.mubr.f32.gmra.mxu0 %v2385
    %v2457 = vpop.f32.mrf.mxu0
    %v2458 = vadd.f32 %v2381, %v2457
    %v2459 = vpop.f32.mrf.mxu0
    %2460 = vdwg.mxu0
    %v2461 = vmax.f32 %v2458, 0.0
    %vm2462 = vcmask 74752
    %v2463 = vsel %vm2462, %v2461, -inf
    %2464 = vmax.xlane.f32.xlu0 %v2463
    %v2465 = vpop.xlane.xlu0 %2464
    %v2466 = vsub.f32 %v2461, %v2465
    %v2467 = vmul.f32 %v2466, 1.442695
    %v2468 = vpow.pop %v2467
    %v2469 = vsel %vm2462, %v2468, 0.0
    %2470 = vadd.xlane.f32.xlu0 %v2469
    %v2471 = vpop.xlane.xlu0 %2470
    %v2472 = vlog2.pop %v2471
    %v2473 = vmul.f32 %v2472, 0.6931472
    %v2474 = vsub.f32 %v2466, %v2473
    %2475 = vst.msk [vmem:[#allocation2] sm:$0x3] %vm2462, %v2474
    // Predicated region
    $region78: #{net_forward.1} parent=1 // pred_check
      _
    $region79: #{net_forward.1} parent=1 // pred_check_branch
      %2477 = sbr.rel (0) target = $region81
    $region80: #{net_forward.1} parent=1 // pred_region
      %s2479 = ssub.s32 32, 32
      %2480 = vsyncadd [#allocation3], %s2479
      %s2482 = sshll.u32 [#allocation2], 4
      %s2483 = int_to_ptr.vmem [resolvable:$true] %s2482
      %2485 = dma.vmem_to_hbm [thread:$0]  %s2483, 32, %s19, [#allocation3]
    $region81: #{net_forward.1} parent=1 // pred_fallthru
      _
    // Predicated region
    $region82: #{net_forward.1} parent=1 // pred_check
      _
    $region83: #{net_forward.1} parent=1 // pred_check_branch
      %2487 = sbr.rel (0) target = $region85
    $region84: #{net_forward.1} parent=1 // pred_region
      %2488 = dma.done [#allocation3], 32
    $region85: #{net_forward.1} parent=1 // pred_fallthru
      _
    %2489 = vsyncpa [#allocation3], 1

</llo_original>
